<compile_context>
chip_gen: v5e
topology: v5e:2x2
jax: 0.10.0
libtpu: 0.0.40
codegen_flags: <defaults>
</compile_context>

<pallas_src>
import functools

import jax
import jax.numpy as jnp
from jax import lax
from jax.experimental import pallas as pl
from jax.experimental.pallas import tpu as pltpu

INPUT_SIZE = 6
HIDDEN_SIZE = 100
OUTPUT_SIZE = 6
SEQ_LEN = 8

HIDDEN_PAD = 128    # pad H 100 -> 128: gate slices on vreg boundaries, aligned MXU dims
OUTPUT_PAD = 128    # lane-dense final store


def _lstm_kernel(x_ref, wih_ref, whh_ref, b_ref, wl_ref, bl_ref, out_ref, pre_sc):
    """Full LSTM recurrence + final linear projection, all resident in VMEM.

    x_ref   : (S, I)        raw input sequence (full-array block, no padding)
    wih_ref : (I, 4*Hp)     fused, gate-pre-scaled input->hidden weights
    whh_ref : (Hp, 4*Hp)    fused, gate-pre-scaled hidden->hidden weights
    b_ref   : (1, 4*Hp)     combined (b_ih + b_hh), fused + gate-pre-scaled
    wl_ref  : (Hp, Op)      final linear weight (transposed, zero-padded)
    bl_ref  : (1, Op)       final linear bias (zero-padded)
    out_ref : (1, Op)       prediction for the last timestep
    pre_sc  : (S, 4*Hp)     hoisted input-projection scratch

    i/f/o gate pre-activations arrive pre-scaled by 0.5, so
    sigmoid(z) == 0.5 * tanh(z/2) + 0.5 is a single shared tanh pass plus fmas.
    """
    hp = whh_ref.shape[0]
    seq_len = x_ref.shape[0]

    # Hoist the input projection (and bias) out of the recurrence: one MXU op,
    # not on the per-step dependency chain.
    pre_sc[...] = (jnp.dot(x_ref[...], wih_ref[...],
                           preferred_element_type=jnp.float32) + b_ref[...])

    def step(t, carry):
        h, c = carry
        # Single fused (1, Hp) @ (Hp, 4*Hp) matmul per timestep.
        gates = pre_sc[pl.ds(t, 1), :] + jnp.dot(
            h, whh_ref[...], preferred_element_type=jnp.float32)
        # One EUP tanh over the whole fused gate block, then cheap VPU fmas.
        tg = jnp.tanh(gates)
        i_g = 0.5 * tg[:, 0 * hp:1 * hp] + 0.5   # sigmoid(pre-scaled i)
        f_g = 0.5 * tg[:, 1 * hp:2 * hp] + 0.5   # sigmoid(pre-scaled f)
        g_g = tg[:, 2 * hp:3 * hp]                # tanh(g)  (scale 1.0)
        o_g = 0.5 * tg[:, 3 * hp:4 * hp] + 0.5   # sigmoid(pre-scaled o)
        c_new = f_g * c + i_g * g_g
        h_new = o_g * jnp.tanh(c_new)
        return (h_new, c_new)

    h0 = jnp.zeros((1, hp), jnp.float32)
    c0 = jnp.zeros((1, hp), jnp.float32)
    # seq_len is static (8): fully unroll; h/c stay in vregs across steps.
    h_T, _ = lax.fori_loop(0, seq_len, step, (h0, c0), unroll=True)

    # predictions[-1] = linear(h_T)
    out_ref[...] = (jnp.dot(h_T, wl_ref[...],
                            preferred_element_type=jnp.float32) + bl_ref[...])


def prepare_params(w_ih, w_hh, b_ih, b_hh, w_lin, b_lin,
                   hidden_pad=HIDDEN_PAD, output_pad=OUTPUT_PAD):
    """One-time weight prep (run at model init, NOT per forward call):
    per-gate transpose, gate fusion along the output axis, zero padding, and
    a 0.5 pre-scale folded into the i/f/o gates (sigmoid -> shared tanh).

    Zero padding keeps padded lanes inert: padded gate pre-activations are
    exactly 0, so tanh(0)=0 gives i=f=o=0.5 and g=0 there, c/h padded lanes
    stay 0, and zeroed W_lin rows make the output exact.
    """
    hidden = w_hh.shape[1]
    out_size = w_lin.shape[0]
    # Gate order i, f, g, o: fold sigmoid's /2 into i, f, o; keep g at 1.0.
    gate_scale = jnp.array([0.5, 0.5, 1.0, 0.5], jnp.float32)

    def fuse_gates(w, row_pad_to):
        in_dim = w.shape[1]
        # w: (4*H, in_dim) in PyTorch [i, f, g, o] order -> (row_pad_to, 4*Hp)
        per_gate = jnp.transpose(w.reshape(4, hidden, in_dim), (0, 2, 1))  # (4, in, H)
        per_gate = per_gate * gate_scale[:, None, None]
        per_gate = jnp.pad(per_gate, ((0, 0), (0, row_pad_to - in_dim),
                                      (0, hidden_pad - hidden)))
        return jnp.transpose(per_gate, (1, 0, 2)).reshape(row_pad_to, 4 * hidden_pad)

    wih_cat = fuse_gates(w_ih, w_ih.shape[1])          # (I, 4*Hp), no row padding
    whh_cat = fuse_gates(w_hh, hidden_pad)             # (Hp, 4*Hp)

    b = (b_ih + b_hh).reshape(4, hidden) * gate_scale[:, None]
    b = jnp.pad(b, ((0, 0), (0, hidden_pad - hidden))).reshape(1, 4 * hidden_pad)

    wl = jnp.pad(w_lin.T, ((0, hidden_pad - hidden), (0, output_pad - out_size)))
    bl = jnp.pad(b_lin, (0, output_pad - out_size)).reshape(1, output_pad)

    return (jnp.asarray(wih_cat, jnp.float32), jnp.asarray(whh_cat, jnp.float32),
            jnp.asarray(b, jnp.float32), jnp.asarray(wl, jnp.float32),
            jnp.asarray(bl, jnp.float32))


@functools.partial(jax.jit, static_argnames=("out_size",))
def lstm_forward(x, wih_cat, whh_cat, b, wl, bl, out_size=OUTPUT_SIZE):
    """x: (seq_len, input_size). Returns (output_size,) — matches predictions[-1]."""
    seq_len, _ = x.shape
    hidden_pad = whh_cat.shape[0]
    output_pad = wl.shape[1]

    vmem = pl.BlockSpec(memory_space=pltpu.MemorySpace.VMEM)
    out = pl.pallas_call(
        _lstm_kernel,
        out_shape=jax.ShapeDtypeStruct((1, output_pad), jnp.float32),
        in_specs=[vmem] * 6,
        out_specs=vmem,
        scratch_shapes=[
            pltpu.VMEM((seq_len, 4 * hidden_pad), jnp.float32),   # hoisted projection
        ],
    )(x.astype(jnp.float32), wih_cat, whh_cat, b, wl, bl)
    return out[0, :out_size]


def _reference(x, w_ih, w_hh, b_ih, b_hh, w_lin, b_lin):
    """Pure-JAX reference mirroring torch.nn.LSTM + Linear, last timestep only."""
    H = w_hh.shape[1]
    h = jnp.zeros((1, H), jnp.float32)
    c = jnp.zeros((1, H), jnp.float32)
    for t in range(x.shape[0]):
        gates = x[t:t + 1] @ w_ih.T + b_ih + h @ w_hh.T + b_hh
        i = jax.nn.sigmoid(gates[:, 0:H])
        f = jax.nn.sigmoid(gates[:, H:2 * H])
        g = jnp.tanh(gates[:, 2 * H:3 * H])
        o = jax.nn.sigmoid(gates[:, 3 * H:4 * H])
        c = f * c + i * g
        h = o * jnp.tanh(c)
    return (h @ w_lin.T + b_lin)[0]


if __name__ == "__main__":
    key = jax.random.PRNGKey(0)
    ks = jax.random.split(key, 7)
    bound = 1.0 / (HIDDEN_SIZE ** 0.5)   # PyTorch default init range

    x = jax.random.normal(ks[0], (SEQ_LEN, INPUT_SIZE), jnp.float32)
    w_ih = jax.random.uniform(ks[1], (4 * HIDDEN_SIZE, INPUT_SIZE), jnp.float32,
                              -bound, bound)
    w_hh = jax.random.uniform(ks[2], (4 * HIDDEN_SIZE, HIDDEN_SIZE), jnp.float32,
                              -bound, bound)
    b_ih = jax.random.uniform(ks[3], (4 * HIDDEN_SIZE,), jnp.float32, -bound, bound)
    b_hh = jax.random.uniform(ks[4], (4 * HIDDEN_SIZE,), jnp.float32, -bound, bound)
    w_lin = jax.random.uniform(ks[5], (OUTPUT_SIZE, HIDDEN_SIZE), jnp.float32,
                               -bound, bound)
    b_lin = jax.random.uniform(ks[6], (OUTPUT_SIZE,), jnp.float32, -bound, bound)

    # One-time parameter prep (cached outside the per-call jit path).
    params = prepare_params(w_ih, w_hh, b_ih, b_hh, w_lin, b_lin)
    params = jax.block_until_ready(params)

    pred = lstm_forward(x, *params)
    pred = jax.block_until_ready(pred)

    ref = _reference(x, w_ih, w_hh, b_ih, b_hh, w_lin, b_lin)
    assert pred.shape == (OUTPUT_SIZE,)
    assert jnp.allclose(pred, ref, rtol=1e-4, atol=1e-4), (pred, ref)

    print("KERNEL_OK")
</pallas_src>

<mosaic_0001>
module attributes {stable_mosaic.version = 11 : i64} {
  func.func @_lstm_kernel(%arg0: memref<8x6xf32, #tpu.memory_space<vmem>>, %arg1: memref<6x512xf32, #tpu.memory_space<vmem>>, %arg2: memref<128x512xf32, #tpu.memory_space<vmem>>, %arg3: memref<1x512xf32, #tpu.memory_space<vmem>>, %arg4: memref<128x128xf32, #tpu.memory_space<vmem>>, %arg5: memref<1x128xf32, #tpu.memory_space<vmem>>, %arg6: memref<1x128xf32, #tpu.memory_space<vmem>>, %arg7: memref<8x512xf32, #tpu.memory_space<vmem>>) attributes {dimension_semantics = [], scalar_prefetch = 0 : i64, scratch_operands = 1 : i64, tpu.core_type = #tpu.core_type<tc>} {
    %c0 = arith.constant 0 : index
    %c0_0 = arith.constant 0 : index
    %0 = vector.load %arg0[%c0, %c0_0] : memref<8x6xf32, #tpu.memory_space<vmem>>, vector<8x6xf32>
    %c0_1 = arith.constant 0 : index
    %c0_2 = arith.constant 0 : index
    %1 = vector.load %arg1[%c0_1, %c0_2] : memref<6x512xf32, #tpu.memory_space<vmem>>, vector<6x512xf32>
    %cst = arith.constant dense<0.000000e+00> : vector<8x512xf32>
    %2 = tpu.matmul %0, %1, %cst {dimension_numbers = #tpu.dot_dimension_numbers<[1], [0], [0], [1], [0, 0, 1, 1], [], []>} : vector<8x6xf32>, vector<6x512xf32>, vector<8x512xf32> -> vector<8x512xf32>
    %c0_3 = arith.constant 0 : index
    %c0_4 = arith.constant 0 : index
    %3 = vector.load %arg3[%c0_3, %c0_4] : memref<1x512xf32, #tpu.memory_space<vmem>>, vector<1x512xf32>
    %4 = vector.broadcast %3 : vector<1x512xf32> to vector<8x512xf32>
    %5 = arith.addf %2, %4 : vector<8x512xf32>
    %c0_5 = arith.constant 0 : index
    %c0_6 = arith.constant 0 : index
    %6 = vector.load %arg7[%c0_5, %c0_6] : memref<8x512xf32, #tpu.memory_space<vmem>>, vector<8x512xf32>
    tpu.vector_store %arg7[%c0_5, %c0_6], %5 {strides = array<i32>} : memref<8x512xf32, #tpu.memory_space<vmem>>, vector<8x512xf32>,
    %cst_7 = arith.constant 0.000000e+00 : f32
    %7 = vector.broadcast %cst_7 : f32 to vector<1x128xf32>
    %cst_8 = arith.constant 0.000000e+00 : f32
    %8 = vector.broadcast %cst_8 : f32 to vector<1x128xf32>
    %c0_i32 = arith.constant 0 : i32
    %9 = arith.index_cast %c0_i32 : i32 to index
    %c0_9 = arith.constant 0 : index
    %10 = vector.load %arg7[%9, %c0_9] : memref<8x512xf32, #tpu.memory_space<vmem>>, vector<1x512xf32>
    %c0_10 = arith.constant 0 : index
    %c0_11 = arith.constant 0 : index
    %11 = vector.load %arg2[%c0_10, %c0_11] : memref<128x512xf32, #tpu.memory_space<vmem>>, vector<128x512xf32>
    %cst_12 = arith.constant dense<0.000000e+00> : vector<1x512xf32>
    %12 = tpu.matmul %7, %11, %cst_12 {dimension_numbers = #tpu.dot_dimension_numbers<[1], [0], [0], [1], [0, 0, 1, 1], [], []>} : vector<1x128xf32>, vector<128x512xf32>, vector<1x512xf32> -> vector<1x512xf32>
    %13 = arith.addf %10, %12 : vector<1x512xf32>
    %14 = math.tanh %13 : vector<1x512xf32>
    %15 = vector.extract_strided_slice %14 {offsets = [0, 0], sizes = [1, 128], strides = [1, 1]} : vector<1x512xf32> to vector<1x128xf32>
    %cst_13 = arith.constant 5.000000e-01 : f32
    %16 = vector.broadcast %cst_13 : f32 to vector<1x128xf32>
    %17 = arith.mulf %16, %15 : vector<1x128xf32>
    %cst_14 = arith.constant 5.000000e-01 : f32
    %18 = vector.broadcast %cst_14 : f32 to vector<1x128xf32>
    %19 = arith.addf %17, %18 : vector<1x128xf32>
    %20 = vector.extract_strided_slice %14 {offsets = [0, 128], sizes = [1, 128], strides = [1, 1]} : vector<1x512xf32> to vector<1x128xf32>
    %cst_15 = arith.constant 5.000000e-01 : f32
    %21 = vector.broadcast %cst_15 : f32 to vector<1x128xf32>
    %22 = arith.mulf %21, %20 : vector<1x128xf32>
    %cst_16 = arith.constant 5.000000e-01 : f32
    %23 = vector.broadcast %cst_16 : f32 to vector<1x128xf32>
    %24 = arith.addf %22, %23 : vector<1x128xf32>
    %25 = vector.extract_strided_slice %14 {offsets = [0, 256], sizes = [1, 128], strides = [1, 1]} : vector<1x512xf32> to vector<1x128xf32>
    %26 = vector.extract_strided_slice %14 {offsets = [0, 384], sizes = [1, 128], strides = [1, 1]} : vector<1x512xf32> to vector<1x128xf32>
    %cst_17 = arith.constant 5.000000e-01 : f32
    %27 = vector.broadcast %cst_17 : f32 to vector<1x128xf32>
    %28 = arith.mulf %27, %26 : vector<1x128xf32>
    %cst_18 = arith.constant 5.000000e-01 : f32
    %29 = vector.broadcast %cst_18 : f32 to vector<1x128xf32>
    %30 = arith.addf %28, %29 : vector<1x128xf32>
    %31 = arith.mulf %24, %8 : vector<1x128xf32>
    %32 = arith.mulf %19, %25 : vector<1x128xf32>
    %33 = arith.addf %31, %32 : vector<1x128xf32>
    %34 = math.tanh %33 : vector<1x128xf32>
    %35 = arith.mulf %30, %34 : vector<1x128xf32>
    %c1_i32 = arith.constant 1 : i32
    %36 = arith.index_cast %c1_i32 : i32 to index
    %c0_19 = arith.constant 0 : index
    %37 = vector.load %arg7[%36, %c0_19] : memref<8x512xf32, #tpu.memory_space<vmem>>, vector<1x512xf32>
    %c0_20 = arith.constant 0 : index
    %c0_21 = arith.constant 0 : index
    %38 = vector.load %arg2[%c0_20, %c0_21] : memref<128x512xf32, #tpu.memory_space<vmem>>, vector<128x512xf32>
    %cst_22 = arith.constant dense<0.000000e+00> : vector<1x512xf32>
    %39 = tpu.matmul %35, %38, %cst_22 {dimension_numbers = #tpu.dot_dimension_numbers<[1], [0], [0], [1], [0, 0, 1, 1], [], []>} : vector<1x128xf32>, vector<128x512xf32>, vector<1x512xf32> -> vector<1x512xf32>
    %40 = arith.addf %37, %39 : vector<1x512xf32>
    %41 = math.tanh %40 : vector<1x512xf32>
    %42 = vector.extract_strided_slice %41 {offsets = [0, 0], sizes = [1, 128], strides = [1, 1]} : vector<1x512xf32> to vector<1x128xf32>
    %cst_23 = arith.constant 5.000000e-01 : f32
    %43 = vector.broadcast %cst_23 : f32 to vector<1x128xf32>
    %44 = arith.mulf %43, %42 : vector<1x128xf32>
    %cst_24 = arith.constant 5.000000e-01 : f32
    %45 = vector.broadcast %cst_24 : f32 to vector<1x128xf32>
    %46 = arith.addf %44, %45 : vector<1x128xf32>
    %47 = vector.extract_strided_slice %41 {offsets = [0, 128], sizes = [1, 128], strides = [1, 1]} : vector<1x512xf32> to vector<1x128xf32>
    %cst_25 = arith.constant 5.000000e-01 : f32
    %48 = vector.broadcast %cst_25 : f32 to vector<1x128xf32>
    %49 = arith.mulf %48, %47 : vector<1x128xf32>
    %cst_26 = arith.constant 5.000000e-01 : f32
    %50 = vector.broadcast %cst_26 : f32 to vector<1x128xf32>
    %51 = arith.addf %49, %50 : vector<1x128xf32>
    %52 = vector.extract_strided_slice %41 {offsets = [0, 256], sizes = [1, 128], strides = [1, 1]} : vector<1x512xf32> to vector<1x128xf32>
    %53 = vector.extract_strided_slice %41 {offsets = [0, 384], sizes = [1, 128], strides = [1, 1]} : vector<1x512xf32> to vector<1x128xf32>
    %cst_27 = arith.constant 5.000000e-01 : f32
    %54 = vector.broadcast %cst_27 : f32 to vector<1x128xf32>
    %55 = arith.mulf %54, %53 : vector<1x128xf32>
    %cst_28 = arith.constant 5.000000e-01 : f32
    %56 = vector.broadcast %cst_28 : f32 to vector<1x128xf32>
    %57 = arith.addf %55, %56 : vector<1x128xf32>
    %58 = arith.mulf %51, %33 : vector<1x128xf32>
    %59 = arith.mulf %46, %52 : vector<1x128xf32>
    %60 = arith.addf %58, %59 : vector<1x128xf32>
    %61 = math.tanh %60 : vector<1x128xf32>
    %62 = arith.mulf %57, %61 : vector<1x128xf32>
    %c2_i32 = arith.constant 2 : i32
    %63 = arith.index_cast %c2_i32 : i32 to index
    %c0_29 = arith.constant 0 : index
    %64 = vector.load %arg7[%63, %c0_29] : memref<8x512xf32, #tpu.memory_space<vmem>>, vector<1x512xf32>
    %c0_30 = arith.constant 0 : index
    %c0_31 = arith.constant 0 : index
    %65 = vector.load %arg2[%c0_30, %c0_31] : memref<128x512xf32, #tpu.memory_space<vmem>>, vector<128x512xf32>
    %cst_32 = arith.constant dense<0.000000e+00> : vector<1x512xf32>
    %66 = tpu.matmul %62, %65, %cst_32 {dimension_numbers = #tpu.dot_dimension_numbers<[1], [0], [0], [1], [0, 0, 1, 1], [], []>} : vector<1x128xf32>, vector<128x512xf32>, vector<1x512xf32> -> vector<1x512xf32>
    %67 = arith.addf %64, %66 : vector<1x512xf32>
    %68 = math.tanh %67 : vector<1x512xf32>
    %69 = vector.extract_strided_slice %68 {offsets = [0, 0], sizes = [1, 128], strides = [1, 1]} : vector<1x512xf32> to vector<1x128xf32>
    %cst_33 = arith.constant 5.000000e-01 : f32
    %70 = vector.broadcast %cst_33 : f32 to vector<1x128xf32>
    %71 = arith.mulf %70, %69 : vector<1x128xf32>
    %cst_34 = arith.constant 5.000000e-01 : f32
    %72 = vector.broadcast %cst_34 : f32 to vector<1x128xf32>
    %73 = arith.addf %71, %72 : vector<1x128xf32>
    %74 = vector.extract_strided_slice %68 {offsets = [0, 128], sizes = [1, 128], strides = [1, 1]} : vector<1x512xf32> to vector<1x128xf32>
    %cst_35 = arith.constant 5.000000e-01 : f32
    %75 = vector.broadcast %cst_35 : f32 to vector<1x128xf32>
    %76 = arith.mulf %75, %74 : vector<1x128xf32>
    %cst_36 = arith.constant 5.000000e-01 : f32
    %77 = vector.broadcast %cst_36 : f32 to vector<1x128xf32>
    %78 = arith.addf %76, %77 : vector<1x128xf32>
    %79 = vector.extract_strided_slice %68 {offsets = [0, 256], sizes = [1, 128], strides = [1, 1]} : vector<1x512xf32> to vector<1x128xf32>
    %80 = vector.extract_strided_slice %68 {offsets = [0, 384], sizes = [1, 128], strides = [1, 1]} : vector<1x512xf32> to vector<1x128xf32>
    %cst_37 = arith.constant 5.000000e-01 : f32
    %81 = vector.broadcast %cst_37 : f32 to vector<1x128xf32>
    %82 = arith.mulf %81, %80 : vector<1x128xf32>
    %cst_38 = arith.constant 5.000000e-01 : f32
    %83 = vector.broadcast %cst_38 : f32 to vector<1x128xf32>
    %84 = arith.addf %82, %83 : vector<1x128xf32>
    %85 = arith.mulf %78, %60 : vector<1x128xf32>
    %86 = arith.mulf %73, %79 : vector<1x128xf32>
    %87 = arith.addf %85, %86 : vector<1x128xf32>
    %88 = math.tanh %87 : vector<1x128xf32>
    %89 = arith.mulf %84, %88 : vector<1x128xf32>
    %c3_i32 = arith.constant 3 : i32
    %90 = arith.index_cast %c3_i32 : i32 to index
    %c0_39 = arith.constant 0 : index
    %91 = vector.load %arg7[%90, %c0_39] : memref<8x512xf32, #tpu.memory_space<vmem>>, vector<1x512xf32>
    %c0_40 = arith.constant 0 : index
    %c0_41 = arith.constant 0 : index
    %92 = vector.load %arg2[%c0_40, %c0_41] : memref<128x512xf32, #tpu.memory_space<vmem>>, vector<128x512xf32>
    %cst_42 = arith.constant dense<0.000000e+00> : vector<1x512xf32>
    %93 = tpu.matmul %89, %92, %cst_42 {dimension_numbers = #tpu.dot_dimension_numbers<[1], [0], [0], [1], [0, 0, 1, 1], [], []>} : vector<1x128xf32>, vector<128x512xf32>, vector<1x512xf32> -> vector<1x512xf32>
    %94 = arith.addf %91, %93 : vector<1x512xf32>
    %95 = math.tanh %94 : vector<1x512xf32>
    %96 = vector.extract_strided_slice %95 {offsets = [0, 0], sizes = [1, 128], strides = [1, 1]} : vector<1x512xf32> to vector<1x128xf32>
    %cst_43 = arith.constant 5.000000e-01 : f32
    %97 = vector.broadcast %cst_43 : f32 to vector<1x128xf32>
    %98 = arith.mulf %97, %96 : vector<1x128xf32>
    %cst_44 = arith.constant 5.000000e-01 : f32
    %99 = vector.broadcast %cst_44 : f32 to vector<1x128xf32>
    %100 = arith.addf %98, %99 : vector<1x128xf32>
    %101 = vector.extract_strided_slice %95 {offsets = [0, 128], sizes = [1, 128], strides = [1, 1]} : vector<1x512xf32> to vector<1x128xf32>
    %cst_45 = arith.constant 5.000000e-01 : f32
    %102 = vector.broadcast %cst_45 : f32 to vector<1x128xf32>
    %103 = arith.mulf %102, %101 : vector<1x128xf32>
    %cst_46 = arith.constant 5.000000e-01 : f32
    %104 = vector.broadcast %cst_46 : f32 to vector<1x128xf32>
    %105 = arith.addf %103, %104 : vector<1x128xf32>
    %106 = vector.extract_strided_slice %95 {offsets = [0, 256], sizes = [1, 128], strides = [1, 1]} : vector<1x512xf32> to vector<1x128xf32>
    %107 = vector.extract_strided_slice %95 {offsets = [0, 384], sizes = [1, 128], strides = [1, 1]} : vector<1x512xf32> to vector<1x128xf32>
    %cst_47 = arith.constant 5.000000e-01 : f32
    %108 = vector.broadcast %cst_47 : f32 to vector<1x128xf32>
    %109 = arith.mulf %108, %107 : vector<1x128xf32>
    %cst_48 = arith.constant 5.000000e-01 : f32
    %110 = vector.broadcast %cst_48 : f32 to vector<1x128xf32>
    %111 = arith.addf %109, %110 : vector<1x128xf32>
    %112 = arith.mulf %105, %87 : vector<1x128xf32>
    %113 = arith.mulf %100, %106 : vector<1x128xf32>
    %114 = arith.addf %112, %113 : vector<1x128xf32>
    %115 = math.tanh %114 : vector<1x128xf32>
    %116 = arith.mulf %111, %115 : vector<1x128xf32>
    %c4_i32 = arith.constant 4 : i32
    %117 = arith.index_cast %c4_i32 : i32 to index
    %c0_49 = arith.constant 0 : index
    %118 = vector.load %arg7[%117, %c0_49] : memref<8x512xf32, #tpu.memory_space<vmem>>, vector<1x512xf32>
    %c0_50 = arith.constant 0 : index
    %c0_51 = arith.constant 0 : index
    %119 = vector.load %arg2[%c0_50, %c0_51] : memref<128x512xf32, #tpu.memory_space<vmem>>, vector<128x512xf32>
    %cst_52 = arith.constant dense<0.000000e+00> : vector<1x512xf32>
    %120 = tpu.matmul %116, %119, %cst_52 {dimension_numbers = #tpu.dot_dimension_numbers<[1], [0], [0], [1], [0, 0, 1, 1], [], []>} : vector<1x128xf32>, vector<128x512xf32>, vector<1x512xf32> -> vector<1x512xf32>
    %121 = arith.addf %118, %120 : vector<1x512xf32>
    %122 = math.tanh %121 : vector<1x512xf32>
    %123 = vector.extract_strided_slice %122 {offsets = [0, 0], sizes = [1, 128], strides = [1, 1]} : vector<1x512xf32> to vector<1x128xf32>
    %cst_53 = arith.constant 5.000000e-01 : f32
    %124 = vector.broadcast %cst_53 : f32 to vector<1x128xf32>
    %125 = arith.mulf %124, %123 : vector<1x128xf32>
    %cst_54 = arith.constant 5.000000e-01 : f32
    %126 = vector.broadcast %cst_54 : f32 to vector<1x128xf32>
    %127 = arith.addf %125, %126 : vector<1x128xf32>
    %128 = vector.extract_strided_slice %122 {offsets = [0, 128], sizes = [1, 128], strides = [1, 1]} : vector<1x512xf32> to vector<1x128xf32>
    %cst_55 = arith.constant 5.000000e-01 : f32
    %129 = vector.broadcast %cst_55 : f32 to vector<1x128xf32>
    %130 = arith.mulf %129, %128 : vector<1x128xf32>
    %cst_56 = arith.constant 5.000000e-01 : f32
    %131 = vector.broadcast %cst_56 : f32 to vector<1x128xf32>
    %132 = arith.addf %130, %131 : vector<1x128xf32>
    %133 = vector.extract_strided_slice %122 {offsets = [0, 256], sizes = [1, 128], strides = [1, 1]} : vector<1x512xf32> to vector<1x128xf32>
    %134 = vector.extract_strided_slice %122 {offsets = [0, 384], sizes = [1, 128], strides = [1, 1]} : vector<1x512xf32> to vector<1x128xf32>
    %cst_57 = arith.constant 5.000000e-01 : f32
    %135 = vector.broadcast %cst_57 : f32 to vector<1x128xf32>
    %136 = arith.mulf %135, %134 : vector<1x128xf32>
    %cst_58 = arith.constant 5.000000e-01 : f32
    %137 = vector.broadcast %cst_58 : f32 to vector<1x128xf32>
    %138 = arith.addf %136, %137 : vector<1x128xf32>
    %139 = arith.mulf %132, %114 : vector<1x128xf32>
    %140 = arith.mulf %127, %133 : vector<1x128xf32>
    %141 = arith.addf %139, %140 : vector<1x128xf32>
    %142 = math.tanh %141 : vector<1x128xf32>
    %143 = arith.mulf %138, %142 : vector<1x128xf32>
    %c5_i32 = arith.constant 5 : i32
    %144 = arith.index_cast %c5_i32 : i32 to index
    %c0_59 = arith.constant 0 : index
    %145 = vector.load %arg7[%144, %c0_59] : memref<8x512xf32, #tpu.memory_space<vmem>>, vector<1x512xf32>
    %c0_60 = arith.constant 0 : index
    %c0_61 = arith.constant 0 : index
    %146 = vector.load %arg2[%c0_60, %c0_61] : memref<128x512xf32, #tpu.memory_space<vmem>>, vector<128x512xf32>
    %cst_62 = arith.constant dense<0.000000e+00> : vector<1x512xf32>
    %147 = tpu.matmul %143, %146, %cst_62 {dimension_numbers = #tpu.dot_dimension_numbers<[1], [0], [0], [1], [0, 0, 1, 1], [], []>} : vector<1x128xf32>, vector<128x512xf32>, vector<1x512xf32> -> vector<1x512xf32>
    %148 = arith.addf %145, %147 : vector<1x512xf32>
    %149 = math.tanh %148 : vector<1x512xf32>
    %150 = vector.extract_strided_slice %149 {offsets = [0, 0], sizes = [1, 128], strides = [1, 1]} : vector<1x512xf32> to vector<1x128xf32>
    %cst_63 = arith.constant 5.000000e-01 : f32
    %151 = vector.broadcast %cst_63 : f32 to vector<1x128xf32>
    %152 = arith.mulf %151, %150 : vector<1x128xf32>
    %cst_64 = arith.constant 5.000000e-01 : f32
    %153 = vector.broadcast %cst_64 : f32 to vector<1x128xf32>
    %154 = arith.addf %152, %153 : vector<1x128xf32>
    %155 = vector.extract_strided_slice %149 {offsets = [0, 128], sizes = [1, 128], strides = [1, 1]} : vector<1x512xf32> to vector<1x128xf32>
    %cst_65 = arith.constant 5.000000e-01 : f32
    %156 = vector.broadcast %cst_65 : f32 to vector<1x128xf32>
    %157 = arith.mulf %156, %155 : vector<1x128xf32>
    %cst_66 = arith.constant 5.000000e-01 : f32
    %158 = vector.broadcast %cst_66 : f32 to vector<1x128xf32>
    %159 = arith.addf %157, %158 : vector<1x128xf32>
    %160 = vector.extract_strided_slice %149 {offsets = [0, 256], sizes = [1, 128], strides = [1, 1]} : vector<1x512xf32> to vector<1x128xf32>
    %161 = vector.extract_strided_slice %149 {offsets = [0, 384], sizes = [1, 128], strides = [1, 1]} : vector<1x512xf32> to vector<1x128xf32>
    %cst_67 = arith.constant 5.000000e-01 : f32
    %162 = vector.broadcast %cst_67 : f32 to vector<1x128xf32>
    %163 = arith.mulf %162, %161 : vector<1x128xf32>
    %cst_68 = arith.constant 5.000000e-01 : f32
    %164 = vector.broadcast %cst_68 : f32 to vector<1x128xf32>
    %165 = arith.addf %163, %164 : vector<1x128xf32>
    %166 = arith.mulf %159, %141 : vector<1x128xf32>
    %167 = arith.mulf %154, %160 : vector<1x128xf32>
    %168 = arith.addf %166, %167 : vector<1x128xf32>
    %169 = math.tanh %168 : vector<1x128xf32>
    %170 = arith.mulf %165, %169 : vector<1x128xf32>
    %c6_i32 = arith.constant 6 : i32
    %171 = arith.index_cast %c6_i32 : i32 to index
    %c0_69 = arith.constant 0 : index
    %172 = vector.load %arg7[%171, %c0_69] : memref<8x512xf32, #tpu.memory_space<vmem>>, vector<1x512xf32>
    %c0_70 = arith.constant 0 : index
    %c0_71 = arith.constant 0 : index
    %173 = vector.load %arg2[%c0_70, %c0_71] : memref<128x512xf32, #tpu.memory_space<vmem>>, vector<128x512xf32>
    %cst_72 = arith.constant dense<0.000000e+00> : vector<1x512xf32>
    %174 = tpu.matmul %170, %173, %cst_72 {dimension_numbers = #tpu.dot_dimension_numbers<[1], [0], [0], [1], [0, 0, 1, 1], [], []>} : vector<1x128xf32>, vector<128x512xf32>, vector<1x512xf32> -> vector<1x512xf32>
    %175 = arith.addf %172, %174 : vector<1x512xf32>
    %176 = math.tanh %175 : vector<1x512xf32>
    %177 = vector.extract_strided_slice %176 {offsets = [0, 0], sizes = [1, 128], strides = [1, 1]} : vector<1x512xf32> to vector<1x128xf32>
    %cst_73 = arith.constant 5.000000e-01 : f32
    %178 = vector.broadcast %cst_73 : f32 to vector<1x128xf32>
    %179 = arith.mulf %178, %177 : vector<1x128xf32>
    %cst_74 = arith.constant 5.000000e-01 : f32
    %180 = vector.broadcast %cst_74 : f32 to vector<1x128xf32>
    %181 = arith.addf %179, %180 : vector<1x128xf32>
    %182 = vector.extract_strided_slice %176 {offsets = [0, 128], sizes = [1, 128], strides = [1, 1]} : vector<1x512xf32> to vector<1x128xf32>
    %cst_75 = arith.constant 5.000000e-01 : f32
    %183 = vector.broadcast %cst_75 : f32 to vector<1x128xf32>
    %184 = arith.mulf %183, %182 : vector<1x128xf32>
    %cst_76 = arith.constant 5.000000e-01 : f32
    %185 = vector.broadcast %cst_76 : f32 to vector<1x128xf32>
    %186 = arith.addf %184, %185 : vector<1x128xf32>
    %187 = vector.extract_strided_slice %176 {offsets = [0, 256], sizes = [1, 128], strides = [1, 1]} : vector<1x512xf32> to vector<1x128xf32>
    %188 = vector.extract_strided_slice %176 {offsets = [0, 384], sizes = [1, 128], strides = [1, 1]} : vector<1x512xf32> to vector<1x128xf32>
    %cst_77 = arith.constant 5.000000e-01 : f32
    %189 = vector.broadcast %cst_77 : f32 to vector<1x128xf32>
    %190 = arith.mulf %189, %188 : vector<1x128xf32>
    %cst_78 = arith.constant 5.000000e-01 : f32
    %191 = vector.broadcast %cst_78 : f32 to vector<1x128xf32>
    %192 = arith.addf %190, %191 : vector<1x128xf32>
    %193 = arith.mulf %186, %168 : vector<1x128xf32>
    %194 = arith.mulf %181, %187 : vector<1x128xf32>
    %195 = arith.addf %193, %194 : vector<1x128xf32>
    %196 = math.tanh %195 : vector<1x128xf32>
    %197 = arith.mulf %192, %196 : vector<1x128xf32>
    %c7_i32 = arith.constant 7 : i32
    %198 = arith.index_cast %c7_i32 : i32 to index
    %c0_79 = arith.constant 0 : index
    %199 = vector.load %arg7[%198, %c0_79] : memref<8x512xf32, #tpu.memory_space<vmem>>, vector<1x512xf32>
    %c0_80 = arith.constant 0 : index
    %c0_81 = arith.constant 0 : index
    %200 = vector.load %arg2[%c0_80, %c0_81] : memref<128x512xf32, #tpu.memory_space<vmem>>, vector<128x512xf32>
    %cst_82 = arith.constant dense<0.000000e+00> : vector<1x512xf32>
    %201 = tpu.matmul %197, %200, %cst_82 {dimension_numbers = #tpu.dot_dimension_numbers<[1], [0], [0], [1], [0, 0, 1, 1], [], []>} : vector<1x128xf32>, vector<128x512xf32>, vector<1x512xf32> -> vector<1x512xf32>
    %202 = arith.addf %199, %201 : vector<1x512xf32>
    %203 = math.tanh %202 : vector<1x512xf32>
    %204 = vector.extract_strided_slice %203 {offsets = [0, 0], sizes = [1, 128], strides = [1, 1]} : vector<1x512xf32> to vector<1x128xf32>
    %cst_83 = arith.constant 5.000000e-01 : f32
    %205 = vector.broadcast %cst_83 : f32 to vector<1x128xf32>
    %206 = arith.mulf %205, %204 : vector<1x128xf32>
    %cst_84 = arith.constant 5.000000e-01 : f32
    %207 = vector.broadcast %cst_84 : f32 to vector<1x128xf32>
    %208 = arith.addf %206, %207 : vector<1x128xf32>
    %209 = vector.extract_strided_slice %203 {offsets = [0, 128], sizes = [1, 128], strides = [1, 1]} : vector<1x512xf32> to vector<1x128xf32>
    %cst_85 = arith.constant 5.000000e-01 : f32
    %210 = vector.broadcast %cst_85 : f32 to vector<1x128xf32>
    %211 = arith.mulf %210, %209 : vector<1x128xf32>
    %cst_86 = arith.constant 5.000000e-01 : f32
    %212 = vector.broadcast %cst_86 : f32 to vector<1x128xf32>
    %213 = arith.addf %211, %212 : vector<1x128xf32>
    %214 = vector.extract_strided_slice %203 {offsets = [0, 256], sizes = [1, 128], strides = [1, 1]} : vector<1x512xf32> to vector<1x128xf32>
    %215 = vector.extract_strided_slice %203 {offsets = [0, 384], sizes = [1, 128], strides = [1, 1]} : vector<1x512xf32> to vector<1x128xf32>
    %cst_87 = arith.constant 5.000000e-01 : f32
    %216 = vector.broadcast %cst_87 : f32 to vector<1x128xf32>
    %217 = arith.mulf %216, %215 : vector<1x128xf32>
    %cst_88 = arith.constant 5.000000e-01 : f32
    %218 = vector.broadcast %cst_88 : f32 to vector<1x128xf32>
    %219 = arith.addf %217, %218 : vector<1x128xf32>
    %220 = arith.mulf %213, %195 : vector<1x128xf32>
    %221 = arith.mulf %208, %214 : vector<1x128xf32>
    %222 = arith.addf %220, %221 : vector<1x128xf32>
    %223 = math.tanh %222 : vector<1x128xf32>
    %224 = arith.mulf %219, %223 : vector<1x128xf32>
    %c8_i32 = arith.constant 8 : i32
    %c0_89 = arith.constant 0 : index
    %c0_90 = arith.constant 0 : index
    %225 = vector.load %arg4[%c0_89, %c0_90] : memref<128x128xf32, #tpu.memory_space<vmem>>, vector<128x128xf32>
    %cst_91 = arith.constant dense<0.000000e+00> : vector<1x128xf32>
    %226 = tpu.matmul %224, %225, %cst_91 {dimension_numbers = #tpu.dot_dimension_numbers<[1], [0], [0], [1], [0, 0, 1, 1], [], []>} : vector<1x128xf32>, vector<128x128xf32>, vector<1x128xf32> -> vector<1x128xf32>
    %c0_92 = arith.constant 0 : index
    %c0_93 = arith.constant 0 : index
    %227 = vector.load %arg5[%c0_92, %c0_93] : memref<1x128xf32, #tpu.memory_space<vmem>>, vector<1x128xf32>
    %228 = arith.addf %226, %227 : vector<1x128xf32>
    %c0_94 = arith.constant 0 : index
    %c0_95 = arith.constant 0 : index
    %229 = vector.load %arg6[%c0_94, %c0_95] : memref<1x128xf32, #tpu.memory_space<vmem>>, vector<1x128xf32>
    tpu.vector_store %arg6[%c0_94, %c0_95], %228 {strides = array<i32>} : memref<1x128xf32, #tpu.memory_space<vmem>>, vector<1x128xf32>,
    return
  }
}

</mosaic_0001>

<llo_original>
// kernel: lstm_forward.1
$region0: #{lstm_forward.1}
  #allocation0 [shape = 'u32[]', space=smem, size = 0x4, offset = 0x4, fixed_abs, tag = 'smem constant byte address 0x4 - core index']
  #allocation1 [shape = 'u32[72,128]{1,0:T(1,128)}', space=vmem, size = 0x9000, scoped, tag = 'internal scratch']
  #allocation2 [shape = 'f32[8,512]{1,0:T(8,128)}', space=vmem, size = 0x4000, scoped, tag = 'scratch operand']
  %s0 = inlined_call_operand.hbm [shape: f32[8,6], index: 0, kind: input, shape index: {}]
  %s1 = inlined_call_operand.hbm [shape: f32[6,512], index: 1, kind: input, shape index: {}]
  %s2 = inlined_call_operand.hbm [shape: f32[128,512], index: 2, kind: input, shape index: {}]
  %s3 = inlined_call_operand.hbm [shape: f32[1,512], index: 3, kind: input, shape index: {}]
  %s4 = inlined_call_operand.hbm [shape: f32[128,128], index: 4, kind: input, shape index: {}]
  %s5 = inlined_call_operand.vmem [shape: f32[1,128], index: 5, kind: input, shape index: {}]
  %s6 = inlined_call_operand.vmem [shape: f32[1,128], index: 6, kind: output, shape index: {}]
  %s7 = sld [smem:[#allocation0]]
  $region54: #{lstm_forward.1} parent=0
    _
  %s9 = ssub.s32 1, %s7
  %s10 = scalar_select 0, %s9, %s7
  $region1: #{lstm_forward.1} parent=0
    #allocation3 [shape = 'u8[4096]{0}', space=vmem, size = 0x1000, scoped, tag = 'input window, operand 0, single buffered']
    #allocation4 [shape = 's32[1]{0}', space=sflag, size = 0x4, scoped, tag = 'scoped memory for lstm_forward.1']
    #allocation5 [shape = 'u8[16384]{0}', space=vmem, size = 0x4000, scoped, tag = 'input window, operand 1, single buffered']
    #allocation6 [shape = 's32[1]{0}', space=sflag, size = 0x4, scoped, tag = 'scoped memory for lstm_forward.1']
    #allocation7 [shape = 'u8[262144]{0}', space=vmem, size = 0x40000, scoped, tag = 'input window, operand 2, single buffered']
    #allocation8 [shape = 'u8[2048]{0}', space=vmem, size = 0x800, scoped, tag = 'input window, operand 3, single buffered']
    #allocation9 [shape = 's32[1]{0}', space=sflag, size = 0x4, scoped, tag = 'scoped memory for lstm_forward.1']
    #allocation10 [shape = 'u8[65536]{0}', space=vmem, size = 0x10000, scoped, tag = 'input window, operand 4, single buffered']
    %11 = vsyncpa [#allocation4], 0
    %12 = vsyncpa [#allocation6], 0
    %13 = vsyncpa [#allocation9], 0
    // Predicated region
    $region2: #{lstm_forward.1} parent=1 // pred_check
      _
    $region3: #{lstm_forward.1} parent=1 // pred_check_branch
      %15 = sbr.rel (0) target = $region5
    $region4: #{lstm_forward.1} parent=1 // pred_region
      %17 = vsyncadd [#allocation4], 0
      %s19 = sshll.u32 %s0, 4
      %s20 = int_to_ptr.hbm [resolvable:$true] %s19
      %s21 = sshll.u32 [#allocation3], 4
      %s22 = int_to_ptr.vmem [resolvable:$true] %s21
      %24 = dma.hbm_to_vmem [thread:$0]  %s20, 128, %s22, [#allocation4]
    $region5: #{lstm_forward.1} parent=1 // pred_fallthru
      _
    // Predicated region
    $region6: #{lstm_forward.1} parent=1 // pred_check
      _
    $region7: #{lstm_forward.1} parent=1 // pred_check_branch
      %26 = sbr.rel (0) target = $region9
    $region8: #{lstm_forward.1} parent=1 // pred_region
      %28 = vsyncadd [#allocation6], 0
      %s30 = sshll.u32 %s1, 4
      %s31 = int_to_ptr.hbm [resolvable:$true] %s30
      %s32 = sshll.u32 [#allocation5], 4
      %s33 = int_to_ptr.vmem [resolvable:$true] %s32
      %35 = dma.hbm_to_vmem [thread:$0]  %s31, 512, %s33, [#allocation6]
    $region9: #{lstm_forward.1} parent=1 // pred_fallthru
      _
    // Predicated region
    $region10: #{lstm_forward.1} parent=1 // pred_check
      _
    $region11: #{lstm_forward.1} parent=1 // pred_check_branch
      %37 = sbr.rel (0) target = $region13
    $region12: #{lstm_forward.1} parent=1 // pred_region
      %39 = vsyncadd [#allocation6], 0
      %s40 = sshll.u32 %s2, 4
      %s41 = int_to_ptr.hbm [resolvable:$true] %s40
      %s42 = sshll.u32 [#allocation7], 4
      %s43 = int_to_ptr.vmem [resolvable:$true] %s42
      %48 = dma.hbm_to_vmem [thread:$0]  %s41, 8192, %s43, [#allocation6], 512, 512, 32
    $region13: #{lstm_forward.1} parent=1 // pred_fallthru
      _
    // Predicated region
    $region14: #{lstm_forward.1} parent=1 // pred_check
      _
    $region15: #{lstm_forward.1} parent=1 // pred_check_branch
      %50 = sbr.rel (0) target = $region17
    $region16: #{lstm_forward.1} parent=1 // pred_region
      %52 = vsyncadd [#allocation9], 0
      %s54 = sshll.u32 %s3, 4
      %s55 = int_to_ptr.hbm [resolvable:$true] %s54
      %s56 = sshll.u32 [#allocation8], 4
      %s57 = int_to_ptr.vmem [resolvable:$true] %s56
      %59 = dma.hbm_to_vmem [thread:$0]  %s55, 64, %s57, [#allocation9]
    $region17: #{lstm_forward.1} parent=1 // pred_fallthru
      _
    // Predicated region
    $region18: #{lstm_forward.1} parent=1 // pred_check
      _
    $region19: #{lstm_forward.1} parent=1 // pred_check_branch
      %61 = sbr.rel (0) target = $region21
    $region20: #{lstm_forward.1} parent=1 // pred_region
      %63 = vsyncadd [#allocation9], 0
      %s64 = sshll.u32 %s4, 4
      %s65 = int_to_ptr.hbm [resolvable:$true] %s64
      %s66 = sshll.u32 [#allocation10], 4
      %s67 = int_to_ptr.vmem [resolvable:$true] %s66
      %72 = dma.hbm_to_vmem [thread:$0]  %s65, 2048, %s67, [#allocation9], 128, 128, 8
    $region21: #{lstm_forward.1} parent=1 // pred_fallthru
      _
    // Predicated region
    $region22: #{lstm_forward.1} parent=1 // pred_check
      _
    $region23: #{lstm_forward.1} parent=1 // pred_check_branch
      %74 = sbr.rel (0) target = $region25
    $region24: #{lstm_forward.1} parent=1 // pred_region
      _
    $region25: #{lstm_forward.1} parent=1 // pred_fallthru
      _
    // Predicated region
    $region26: #{lstm_forward.1} parent=1 // pred_check
      _
    $region27: #{lstm_forward.1} parent=1 // pred_check_branch
      %76 = sbr.rel (0) target = $region29
    $region28: #{lstm_forward.1} parent=1 // pred_region
      %78 = dma.done [#allocation4], 128
    $region29: #{lstm_forward.1} parent=1 // pred_fallthru
      _
    // Predicated region
    $region30: #{lstm_forward.1} parent=1 // pred_check
      _
    $region31: #{lstm_forward.1} parent=1 // pred_check_branch
      %80 = sbr.rel (0) target = $region33
    $region32: #{lstm_forward.1} parent=1 // pred_region
      %82 = dma.done [#allocation6], 512
    $region33: #{lstm_forward.1} parent=1 // pred_fallthru
      _
    // Predicated region
    $region34: #{lstm_forward.1} parent=1 // pred_check
      _
    $region35: #{lstm_forward.1} parent=1 // pred_check_branch
      %84 = sbr.rel (0) target = $region37
    $region36: #{lstm_forward.1} parent=1 // pred_region
      %86 = dma.done [#allocation6], 8192
    $region37: #{lstm_forward.1} parent=1 // pred_fallthru
      _
    // Predicated region
    $region38: #{lstm_forward.1} parent=1 // pred_check
      _
    $region39: #{lstm_forward.1} parent=1 // pred_check_branch
      %88 = sbr.rel (0) target = $region41
    $region40: #{lstm_forward.1} parent=1 // pred_region
      %90 = dma.done [#allocation9], 64
    $region41: #{lstm_forward.1} parent=1 // pred_fallthru
      _
    // Predicated region
    $region42: #{lstm_forward.1} parent=1 // pred_check
      _
    $region43: #{lstm_forward.1} parent=1 // pred_check_branch
      %92 = sbr.rel (0) target = $region45
    $region44: #{lstm_forward.1} parent=1 // pred_region
      %94 = dma.done [#allocation9], 2048
    $region45: #{lstm_forward.1} parent=1 // pred_fallthru
      _
    %v95 = vld [vmem:[#allocation3] sm:$0xff]
    %v96 = vld [vmem:[#allocation5] sm:$0x3f]
    %v97 = vld [vmem:[#allocation5 + $0x8] sm:$0x3f]
    %v98 = vld [vmem:[#allocation5 + $0x10] sm:$0x3f]
    %v99 = vld [vmem:[#allocation5 + $0x18] sm:$0x3f]
    %v100 = vld [vmem:[#allocation8] sm:$0xf]
    %v102 = vperm.slane %v100, 0
    %v103 = vperm.slane %v100, 1
    %v104 = vperm.slane %v100, 2
    %v105 = vperm.slane %v100, 3
    %vm110 = vcmask 48128
    %v112 = vsel %vm110, %v95, 0
    %vm114 = vcmask 1045504
    %v116 = vsel %vm114, %v96, 0
    %v119 = vsel %vm114, %v97, 0
    %v122 = vsel %vm114, %v98, 0
    %v125 = vsel %vm114, %v99, 0
    %127 = vmatpush.msra.mxu0 0.0
    %128 = vmatpush.msra.mxu0 0.0
    %129 = vmatpush.msra.mxu0 0.0
    %130 = vmatpush.msra.mxu0 0.0
    %131 = vmatpush.msra.mxu0 0.0
    %132 = vmatpush.msra.mxu0 0.0
    %133 = vmatpush.msra.mxu0 0.0
    %134 = vmatpush.msra.mxu0 0.0
    %135 = vmatpush.msra.mxu0 0.0
    %136 = vmatpush.msra.mxu0 0.0
    %137 = vmatpush.msra.mxu0 0.0
    %138 = vmatpush.msra.mxu0 0.0
    %139 = vmatpush.msra.mxu0 0.0
    %140 = vmatpush.msra.mxu0 0.0
    %141 = vmatpush.msra.mxu0 0.0
    %142 = vmatpush.msra.mxu0 %v116
    %143 = vmatmul.f32.gmra.mxu0 %v112
    %v144 = vpop.f32.mrf.mxu0
    %v145 = vadd.f32 %v102, %v144
    %146 = vdwg.mxu0
    %147 = vmatpush.msra.mxu0 0.0
    %148 = vmatpush.msra.mxu0 0.0
    %149 = vmatpush.msra.mxu0 0.0
    %150 = vmatpush.msra.mxu0 0.0
    %151 = vmatpush.msra.mxu0 0.0
    %152 = vmatpush.msra.mxu0 0.0
    %153 = vmatpush.msra.mxu0 0.0
    %154 = vmatpush.msra.mxu0 0.0
    %155 = vmatpush.msra.mxu0 0.0
    %156 = vmatpush.msra.mxu0 0.0
    %157 = vmatpush.msra.mxu0 0.0
    %158 = vmatpush.msra.mxu0 0.0
    %159 = vmatpush.msra.mxu0 0.0
    %160 = vmatpush.msra.mxu0 0.0
    %161 = vmatpush.msra.mxu0 0.0
    %162 = vmatpush.msra.mxu0 %v119
    %163 = vmatmul.f32.gmra.mxu0 %v112
    %v164 = vpop.f32.mrf.mxu0
    %v165 = vadd.f32 %v103, %v164
    %166 = vdwg.mxu0
    %167 = vmatpush.msra.mxu0 0.0
    %168 = vmatpush.msra.mxu0 0.0
    %169 = vmatpush.msra.mxu0 0.0
    %170 = vmatpush.msra.mxu0 0.0
    %171 = vmatpush.msra.mxu0 0.0
    %172 = vmatpush.msra.mxu0 0.0
    %173 = vmatpush.msra.mxu0 0.0
    %174 = vmatpush.msra.mxu0 0.0
    %175 = vmatpush.msra.mxu0 0.0
    %176 = vmatpush.msra.mxu0 0.0
    %177 = vmatpush.msra.mxu0 0.0
    %178 = vmatpush.msra.mxu0 0.0
    %179 = vmatpush.msra.mxu0 0.0
    %180 = vmatpush.msra.mxu0 0.0
    %181 = vmatpush.msra.mxu0 0.0
    %182 = vmatpush.msra.mxu0 %v122
    %183 = vmatmul.f32.gmra.mxu0 %v112
    %v184 = vpop.f32.mrf.mxu0
    %v185 = vadd.f32 %v104, %v184
    %186 = vdwg.mxu0
    %187 = vmatpush.msra.mxu0 0.0
    %188 = vmatpush.msra.mxu0 0.0
    %189 = vmatpush.msra.mxu0 0.0
    %190 = vmatpush.msra.mxu0 0.0
    %191 = vmatpush.msra.mxu0 0.0
    %192 = vmatpush.msra.mxu0 0.0
    %193 = vmatpush.msra.mxu0 0.0
    %194 = vmatpush.msra.mxu0 0.0
    %195 = vmatpush.msra.mxu0 0.0
    %196 = vmatpush.msra.mxu0 0.0
    %197 = vmatpush.msra.mxu0 0.0
    %198 = vmatpush.msra.mxu0 0.0
    %199 = vmatpush.msra.mxu0 0.0
    %200 = vmatpush.msra.mxu0 0.0
    %201 = vmatpush.msra.mxu0 0.0
    %202 = vmatpush.msra.mxu0 %v125
    %203 = vmatmul.f32.gmra.mxu0 %v112
    %v204 = vpop.f32.mrf.mxu0
    %v205 = vadd.f32 %v105, %v204
    %206 = vdwg.mxu0
    %207 = vst [vmem:[#allocation2] sm:$0xff] %v145
    %208 = vst [vmem:[#allocation2 + $0x8] sm:$0xff] %v165
    %209 = vst [vmem:[#allocation2 + $0x10] sm:$0xff] %v185
    %210 = vst [vmem:[#allocation2 + $0x18] sm:$0xff] %v205
    %v211 = vld [vmem:[#allocation2] ss:$8 sm:$0xf]
    %v212 = vld [vmem:[#allocation7] sm:$0xff]
    %v213 = vld [vmem:[#allocation7 + $0x8] sm:$0xff]
    %v214 = vld [vmem:[#allocation7 + $0x10] sm:$0xff]
    %v215 = vld [vmem:[#allocation7 + $0x18] sm:$0xff]
    %v216 = vld [vmem:[#allocation7 + $0x20] sm:$0xff]
    %v217 = vld [vmem:[#allocation7 + $0x28] sm:$0xff]
    %v218 = vld [vmem:[#allocation7 + $0x30] sm:$0xff]
    %v219 = vld [vmem:[#allocation7 + $0x38] sm:$0xff]
    %v220 = vld [vmem:[#allocation7 + $0x40] sm:$0xff]
    %v221 = vld [vmem:[#allocation7 + $0x48] sm:$0xff]
    %v222 = vld [vmem:[#allocation7 + $0x50] sm:$0xff]
    %v223 = vld [vmem:[#allocation7 + $0x58] sm:$0xff]
    %v224 = vld [vmem:[#allocation7 + $0x60] sm:$0xff]
    %v225 = vld [vmem:[#allocation7 + $0x68] sm:$0xff]
    %v226 = vld [vmem:[#allocation7 + $0x70] sm:$0xff]
    %v227 = vld [vmem:[#allocation7 + $0x78] sm:$0xff]
    %v228 = vld [vmem:[#allocation7 + $0x80] sm:$0xff]
    %v229 = vld [vmem:[#allocation7 + $0x88] sm:$0xff]
    %v230 = vld [vmem:[#allocation7 + $0x90] sm:$0xff]
    %v231 = vld [vmem:[#allocation7 + $0x98] sm:$0xff]
    %v232 = vld [vmem:[#allocation7 + $0xa0] sm:$0xff]
    %v233 = vld [vmem:[#allocation7 + $0xa8] sm:$0xff]
    %v234 = vld [vmem:[#allocation7 + $0xb0] sm:$0xff]
    %v235 = vld [vmem:[#allocation7 + $0xb8] sm:$0xff]
    %v236 = vld [vmem:[#allocation7 + $0xc0] sm:$0xff]
    %v237 = vld [vmem:[#allocation7 + $0xc8] sm:$0xff]
    %v238 = vld [vmem:[#allocation7 + $0xd0] sm:$0xff]
    %v239 = vld [vmem:[#allocation7 + $0xd8] sm:$0xff]
    %v240 = vld [vmem:[#allocation7 + $0xe0] sm:$0xff]
    %v241 = vld [vmem:[#allocation7 + $0xe8] sm:$0xff]
    %v242 = vld [vmem:[#allocation7 + $0xf0] sm:$0xff]
    %v243 = vld [vmem:[#allocation7 + $0xf8] sm:$0xff]
    %v244 = vld [vmem:[#allocation7 + $0x100] sm:$0xff]
    %v245 = vld [vmem:[#allocation7 + $0x108] sm:$0xff]
    %v246 = vld [vmem:[#allocation7 + $0x110] sm:$0xff]
    %v247 = vld [vmem:[#allocation7 + $0x118] sm:$0xff]
    %v248 = vld [vmem:[#allocation7 + $0x120] sm:$0xff]
    %v249 = vld [vmem:[#allocation7 + $0x128] sm:$0xff]
    %v250 = vld [vmem:[#allocation7 + $0x130] sm:$0xff]
    %v251 = vld [vmem:[#allocation7 + $0x138] sm:$0xff]
    %v252 = vld [vmem:[#allocation7 + $0x140] sm:$0xff]
    %v253 = vld [vmem:[#allocation7 + $0x148] sm:$0xff]
    %v254 = vld [vmem:[#allocation7 + $0x150] sm:$0xff]
    %v255 = vld [vmem:[#allocation7 + $0x158] sm:$0xff]
    %v256 = vld [vmem:[#allocation7 + $0x160] sm:$0xff]
    %v257 = vld [vmem:[#allocation7 + $0x168] sm:$0xff]
    %v258 = vld [vmem:[#allocation7 + $0x170] sm:$0xff]
    %v259 = vld [vmem:[#allocation7 + $0x178] sm:$0xff]
    %v260 = vld [vmem:[#allocation7 + $0x180] sm:$0xff]
    %v261 = vld [vmem:[#allocation7 + $0x188] sm:$0xff]
    %v262 = vld [vmem:[#allocation7 + $0x190] sm:$0xff]
    %v263 = vld [vmem:[#allocation7 + $0x198] sm:$0xff]
    %v264 = vld [vmem:[#allocation7 + $0x1a0] sm:$0xff]
    %v265 = vld [vmem:[#allocation7 + $0x1a8] sm:$0xff]
    %v266 = vld [vmem:[#allocation7 + $0x1b0] sm:$0xff]
    %v267 = vld [vmem:[#allocation7 + $0x1b8] sm:$0xff]
    %v268 = vld [vmem:[#allocation7 + $0x1c0] sm:$0xff]
    %v269 = vld [vmem:[#allocation7 + $0x1c8] sm:$0xff]
    %v270 = vld [vmem:[#allocation7 + $0x1d0] sm:$0xff]
    %v271 = vld [vmem:[#allocation7 + $0x1d8] sm:$0xff]
    %v272 = vld [vmem:[#allocation7 + $0x1e0] sm:$0xff]
    %v273 = vld [vmem:[#allocation7 + $0x1e8] sm:$0xff]
    %v274 = vld [vmem:[#allocation7 + $0x1f0] sm:$0xff]
    %v275 = vld [vmem:[#allocation7 + $0x1f8] sm:$0xff]
    %276 = vmatpush.msra.mxu0 %v272
    %277 = vmatpush.msra.mxu0 %v268
    %278 = vmatpush.msra.mxu0 %v264
    %279 = vmatpush.msra.mxu0 %v260
    %280 = vmatpush.msra.mxu0 %v256
    %281 = vmatpush.msra.mxu0 %v252
    %282 = vmatpush.msra.mxu0 %v248
    %283 = vmatpush.msra.mxu0 %v244
    %284 = vmatpush.msra.mxu0 %v240
    %285 = vmatpush.msra.mxu0 %v236
    %286 = vmatpush.msra.mxu0 %v232
    %287 = vmatpush.msra.mxu0 %v228
    %288 = vmatpush.msra.mxu0 %v224
    %289 = vmatpush.msra.mxu0 %v220
    %290 = vmatpush.msra.mxu0 %v216
    %291 = vmatpush.msra.mxu0 %v212
    %292 = vmatmul.f32.gmra.mxu0 0.0
    %v293 = vpop.f32.mrf.mxu0
    %v294 = vadd.f32 0.0, %v293
    %295 = vdwg.mxu0
    %296 = vmatpush.msra.mxu0 %v273
    %297 = vmatpush.msra.mxu0 %v269
    %298 = vmatpush.msra.mxu0 %v265
    %299 = vmatpush.msra.mxu0 %v261
    %300 = vmatpush.msra.mxu0 %v257
    %301 = vmatpush.msra.mxu0 %v253
    %302 = vmatpush.msra.mxu0 %v249
    %303 = vmatpush.msra.mxu0 %v245
    %304 = vmatpush.msra.mxu0 %v241
    %305 = vmatpush.msra.mxu0 %v237
    %306 = vmatpush.msra.mxu0 %v233
    %307 = vmatpush.msra.mxu0 %v229
    %308 = vmatpush.msra.mxu0 %v225
    %309 = vmatpush.msra.mxu0 %v221
    %310 = vmatpush.msra.mxu0 %v217
    %311 = vmatpush.msra.mxu0 %v213
    %312 = vmatmul.f32.gmra.mxu0 0.0
    %v313 = vpop.f32.mrf.mxu0
    %v314 = vadd.f32 0.0, %v313
    %315 = vdwg.mxu0
    %316 = vmatpush.msra.mxu0 %v274
    %317 = vmatpush.msra.mxu0 %v270
    %318 = vmatpush.msra.mxu0 %v266
    %319 = vmatpush.msra.mxu0 %v262
    %320 = vmatpush.msra.mxu0 %v258
    %321 = vmatpush.msra.mxu0 %v254
    %322 = vmatpush.msra.mxu0 %v250
    %323 = vmatpush.msra.mxu0 %v246
    %324 = vmatpush.msra.mxu0 %v242
    %325 = vmatpush.msra.mxu0 %v238
    %326 = vmatpush.msra.mxu0 %v234
    %327 = vmatpush.msra.mxu0 %v230
    %328 = vmatpush.msra.mxu0 %v226
    %329 = vmatpush.msra.mxu0 %v222
    %330 = vmatpush.msra.mxu0 %v218
    %331 = vmatpush.msra.mxu0 %v214
    %332 = vmatmul.f32.gmra.mxu0 0.0
    %v333 = vpop.f32.mrf.mxu0
    %v334 = vadd.f32 0.0, %v333
    %335 = vdwg.mxu0
    %336 = vmatpush.msra.mxu0 %v275
    %337 = vmatpush.msra.mxu0 %v271
    %338 = vmatpush.msra.mxu0 %v267
    %339 = vmatpush.msra.mxu0 %v263
    %340 = vmatpush.msra.mxu0 %v259
    %341 = vmatpush.msra.mxu0 %v255
    %342 = vmatpush.msra.mxu0 %v251
    %343 = vmatpush.msra.mxu0 %v247
    %344 = vmatpush.msra.mxu0 %v243
    %345 = vmatpush.msra.mxu0 %v239
    %346 = vmatpush.msra.mxu0 %v235
    %347 = vmatpush.msra.mxu0 %v231
    %348 = vmatpush.msra.mxu0 %v227
    %349 = vmatpush.msra.mxu0 %v223
    %350 = vmatpush.msra.mxu0 %v219
    %351 = vmatpush.msra.mxu0 %v215
    %352 = vmatmul.f32.gmra.mxu0 0.0
    %v353 = vpop.f32.mrf.mxu0
    %v354 = vadd.f32 0.0, %v353
    %355 = vdwg.mxu0
    %v360 = vrot.slane %v314, 7
    %v361 = vrot.slane %v334, 6
    %v362 = vrot.slane %v354, 5
    %vm363 = vcmask 1040384
    %v364 = vsel %vm363, %v294, %v360
    %vm365 = vcmask 1042434
    %v366 = vsel %vm365, %v361, %v362
    %vm367 = vcmask 1041408
    %v368 = vsel %vm367, %v364, %v366
    %v370 = vadd.f32 %v211, %v368
    %v371 = vtanh.pop %v370
    %v372 = vmul.f32 %v371, 0.5
    %v373 = vadd.f32 %v372, 0.5
    %v375 = vrot.slane %v371, 1
    %v377 = vmul.f32 %v375, 0.5
    %v378 = vadd.f32 %v377, 0.5
    %v379 = vrot.slane %v371, 3
    %v381 = vmul.f32 %v379, 0.5
    %v382 = vadd.f32 %v381, 0.5
    %v383 = vmul.f32 %v378, 0.0
    %v384 = vrot.slane %v371, 2
    %v386 = vmul.f32 %v373, %v384
    %v387 = vadd.f32 %v383, %v386
    %v388 = vtanh.pop %v387
    %v389 = vmul.f32 %v382, %v388
    %s390 = scalar_lea.vmem [#allocation2], 1
    %v391 = vld [vmem:[%s390] ss:$8 sm:$0xf]
    %392 = vmatpush.msra.mxu0 %v272
    %393 = vmatpush.msra.mxu0 %v268
    %394 = vmatpush.msra.mxu0 %v264
    %395 = vmatpush.msra.mxu0 %v260
    %396 = vmatpush.msra.mxu0 %v256
    %397 = vmatpush.msra.mxu0 %v252
    %398 = vmatpush.msra.mxu0 %v248
    %399 = vmatpush.msra.mxu0 %v244
    %400 = vmatpush.msra.mxu0 %v240
    %401 = vmatpush.msra.mxu0 %v236
    %402 = vmatpush.msra.mxu0 %v232
    %403 = vmatpush.msra.mxu0 %v228
    %404 = vmatpush.msra.mxu0 %v224
    %405 = vmatpush.msra.mxu0 %v220
    %406 = vmatpush.msra.mxu0 %v216
    %407 = vmatpush.msra.mxu0 %v212
    %408 = vmatmul.f32.gmra.mxu0 %v389
    %v409 = vpop.f32.mrf.mxu0
    %v410 = vadd.f32 0.0, %v409
    %411 = vdwg.mxu0
    %412 = vmatpush.msra.mxu0 %v273
    %413 = vmatpush.msra.mxu0 %v269
    %414 = vmatpush.msra.mxu0 %v265
    %415 = vmatpush.msra.mxu0 %v261
    %416 = vmatpush.msra.mxu0 %v257
    %417 = vmatpush.msra.mxu0 %v253
    %418 = vmatpush.msra.mxu0 %v249
    %419 = vmatpush.msra.mxu0 %v245
    %420 = vmatpush.msra.mxu0 %v241
    %421 = vmatpush.msra.mxu0 %v237
    %422 = vmatpush.msra.mxu0 %v233
    %423 = vmatpush.msra.mxu0 %v229
    %424 = vmatpush.msra.mxu0 %v225
    %425 = vmatpush.msra.mxu0 %v221
    %426 = vmatpush.msra.mxu0 %v217
    %427 = vmatpush.msra.mxu0 %v213
    %428 = vmatmul.f32.gmra.mxu0 %v389
    %v429 = vpop.f32.mrf.mxu0
    %v430 = vadd.f32 0.0, %v429
    %431 = vdwg.mxu0
    %432 = vmatpush.msra.mxu0 %v274
    %433 = vmatpush.msra.mxu0 %v270
    %434 = vmatpush.msra.mxu0 %v266
    %435 = vmatpush.msra.mxu0 %v262
    %436 = vmatpush.msra.mxu0 %v258
    %437 = vmatpush.msra.mxu0 %v254
    %438 = vmatpush.msra.mxu0 %v250
    %439 = vmatpush.msra.mxu0 %v246
    %440 = vmatpush.msra.mxu0 %v242
    %441 = vmatpush.msra.mxu0 %v238
    %442 = vmatpush.msra.mxu0 %v234
    %443 = vmatpush.msra.mxu0 %v230
    %444 = vmatpush.msra.mxu0 %v226
    %445 = vmatpush.msra.mxu0 %v222
    %446 = vmatpush.msra.mxu0 %v218
    %447 = vmatpush.msra.mxu0 %v214
    %448 = vmatmul.f32.gmra.mxu0 %v389
    %v449 = vpop.f32.mrf.mxu0
    %v450 = vadd.f32 0.0, %v449
    %451 = vdwg.mxu0
    %452 = vmatpush.msra.mxu0 %v275
    %453 = vmatpush.msra.mxu0 %v271
    %454 = vmatpush.msra.mxu0 %v267
    %455 = vmatpush.msra.mxu0 %v263
    %456 = vmatpush.msra.mxu0 %v259
    %457 = vmatpush.msra.mxu0 %v255
    %458 = vmatpush.msra.mxu0 %v251
    %459 = vmatpush.msra.mxu0 %v247
    %460 = vmatpush.msra.mxu0 %v243
    %461 = vmatpush.msra.mxu0 %v239
    %462 = vmatpush.msra.mxu0 %v235
    %463 = vmatpush.msra.mxu0 %v231
    %464 = vmatpush.msra.mxu0 %v227
    %465 = vmatpush.msra.mxu0 %v223
    %466 = vmatpush.msra.mxu0 %v219
    %467 = vmatpush.msra.mxu0 %v215
    %468 = vmatmul.f32.gmra.mxu0 %v389
    %v469 = vpop.f32.mrf.mxu0
    %v470 = vadd.f32 0.0, %v469
    %471 = vdwg.mxu0
    %v476 = vrot.slane %v430, 7
    %v477 = vrot.slane %v450, 6
    %v478 = vrot.slane %v470, 5
    %v479 = vsel %vm363, %v410, %v476
    %v480 = vsel %vm365, %v477, %v478
    %v481 = vsel %vm367, %v479, %v480
    %v483 = vadd.f32 %v391, %v481
    %v484 = vtanh.pop %v483
    %v485 = vmul.f32 %v484, 0.5
    %v486 = vadd.f32 %v485, 0.5
    %v488 = vrot.slane %v484, 1
    %v490 = vmul.f32 %v488, 0.5
    %v491 = vadd.f32 %v490, 0.5
    %v492 = vrot.slane %v484, 3
    %v494 = vmul.f32 %v492, 0.5
    %v495 = vadd.f32 %v494, 0.5
    %v496 = vmul.f32 %v491, %v387
    %v497 = vrot.slane %v484, 2
    %v499 = vmul.f32 %v486, %v497
    %v500 = vadd.f32 %v496, %v499
    %v501 = vtanh.pop %v500
    %v502 = vmul.f32 %v495, %v501
    %s503 = scalar_lea.vmem [#allocation2], 2
    %v504 = vld [vmem:[%s503] ss:$8 sm:$0xf]
    %505 = vmatpush.msra.mxu0 %v272
    %506 = vmatpush.msra.mxu0 %v268
    %507 = vmatpush.msra.mxu0 %v264
    %508 = vmatpush.msra.mxu0 %v260
    %509 = vmatpush.msra.mxu0 %v256
    %510 = vmatpush.msra.mxu0 %v252
    %511 = vmatpush.msra.mxu0 %v248
    %512 = vmatpush.msra.mxu0 %v244
    %513 = vmatpush.msra.mxu0 %v240
    %514 = vmatpush.msra.mxu0 %v236
    %515 = vmatpush.msra.mxu0 %v232
    %516 = vmatpush.msra.mxu0 %v228
    %517 = vmatpush.msra.mxu0 %v224
    %518 = vmatpush.msra.mxu0 %v220
    %519 = vmatpush.msra.mxu0 %v216
    %520 = vmatpush.msra.mxu0 %v212
    %521 = vmatmul.f32.gmra.mxu0 %v502
    %v522 = vpop.f32.mrf.mxu0
    %v523 = vadd.f32 0.0, %v522
    %524 = vdwg.mxu0
    %525 = vmatpush.msra.mxu0 %v273
    %526 = vmatpush.msra.mxu0 %v269
    %527 = vmatpush.msra.mxu0 %v265
    %528 = vmatpush.msra.mxu0 %v261
    %529 = vmatpush.msra.mxu0 %v257
    %530 = vmatpush.msra.mxu0 %v253
    %531 = vmatpush.msra.mxu0 %v249
    %532 = vmatpush.msra.mxu0 %v245
    %533 = vmatpush.msra.mxu0 %v241
    %534 = vmatpush.msra.mxu0 %v237
    %535 = vmatpush.msra.mxu0 %v233
    %536 = vmatpush.msra.mxu0 %v229
    %537 = vmatpush.msra.mxu0 %v225
    %538 = vmatpush.msra.mxu0 %v221
    %539 = vmatpush.msra.mxu0 %v217
    %540 = vmatpush.msra.mxu0 %v213
    %541 = vmatmul.f32.gmra.mxu0 %v502
    %v542 = vpop.f32.mrf.mxu0
    %v543 = vadd.f32 0.0, %v542
    %544 = vdwg.mxu0
    %545 = vmatpush.msra.mxu0 %v274
    %546 = vmatpush.msra.mxu0 %v270
    %547 = vmatpush.msra.mxu0 %v266
    %548 = vmatpush.msra.mxu0 %v262
    %549 = vmatpush.msra.mxu0 %v258
    %550 = vmatpush.msra.mxu0 %v254
    %551 = vmatpush.msra.mxu0 %v250
    %552 = vmatpush.msra.mxu0 %v246
    %553 = vmatpush.msra.mxu0 %v242
    %554 = vmatpush.msra.mxu0 %v238
    %555 = vmatpush.msra.mxu0 %v234
    %556 = vmatpush.msra.mxu0 %v230
    %557 = vmatpush.msra.mxu0 %v226
    %558 = vmatpush.msra.mxu0 %v222
    %559 = vmatpush.msra.mxu0 %v218
    %560 = vmatpush.msra.mxu0 %v214
    %561 = vmatmul.f32.gmra.mxu0 %v502
    %v562 = vpop.f32.mrf.mxu0
    %v563 = vadd.f32 0.0, %v562
    %564 = vdwg.mxu0
    %565 = vmatpush.msra.mxu0 %v275
    %566 = vmatpush.msra.mxu0 %v271
    %567 = vmatpush.msra.mxu0 %v267
    %568 = vmatpush.msra.mxu0 %v263
    %569 = vmatpush.msra.mxu0 %v259
    %570 = vmatpush.msra.mxu0 %v255
    %571 = vmatpush.msra.mxu0 %v251
    %572 = vmatpush.msra.mxu0 %v247
    %573 = vmatpush.msra.mxu0 %v243
    %574 = vmatpush.msra.mxu0 %v239
    %575 = vmatpush.msra.mxu0 %v235
    %576 = vmatpush.msra.mxu0 %v231
    %577 = vmatpush.msra.mxu0 %v227
    %578 = vmatpush.msra.mxu0 %v223
    %579 = vmatpush.msra.mxu0 %v219
    %580 = vmatpush.msra.mxu0 %v215
    %581 = vmatmul.f32.gmra.mxu0 %v502
    %v582 = vpop.f32.mrf.mxu0
    %v583 = vadd.f32 0.0, %v582
    %584 = vdwg.mxu0
    %v589 = vrot.slane %v543, 7
    %v590 = vrot.slane %v563, 6
    %v591 = vrot.slane %v583, 5
    %v592 = vsel %vm363, %v523, %v589
    %v593 = vsel %vm365, %v590, %v591
    %v594 = vsel %vm367, %v592, %v593
    %v596 = vadd.f32 %v504, %v594
    %v597 = vtanh.pop %v596
    %v598 = vmul.f32 %v597, 0.5
    %v599 = vadd.f32 %v598, 0.5
    %v601 = vrot.slane %v597, 1
    %v603 = vmul.f32 %v601, 0.5
    %v604 = vadd.f32 %v603, 0.5
    %v605 = vrot.slane %v597, 3
    %v607 = vmul.f32 %v605, 0.5
    %v608 = vadd.f32 %v607, 0.5
    %v609 = vmul.f32 %v604, %v500
    %v610 = vrot.slane %v597, 2
    %v612 = vmul.f32 %v599, %v610
    %v613 = vadd.f32 %v609, %v612
    %v614 = vtanh.pop %v613
    %v615 = vmul.f32 %v608, %v614
    %s616 = scalar_lea.vmem [#allocation2], 3
    %v617 = vld [vmem:[%s616] ss:$8 sm:$0xf]
    %618 = vmatpush.msra.mxu0 %v272
    %619 = vmatpush.msra.mxu0 %v268
    %620 = vmatpush.msra.mxu0 %v264
    %621 = vmatpush.msra.mxu0 %v260
    %622 = vmatpush.msra.mxu0 %v256
    %623 = vmatpush.msra.mxu0 %v252
    %624 = vmatpush.msra.mxu0 %v248
    %625 = vmatpush.msra.mxu0 %v244
    %626 = vmatpush.msra.mxu0 %v240
    %627 = vmatpush.msra.mxu0 %v236
    %628 = vmatpush.msra.mxu0 %v232
    %629 = vmatpush.msra.mxu0 %v228
    %630 = vmatpush.msra.mxu0 %v224
    %631 = vmatpush.msra.mxu0 %v220
    %632 = vmatpush.msra.mxu0 %v216
    %633 = vmatpush.msra.mxu0 %v212
    %634 = vmatmul.f32.gmra.mxu0 %v615
    %v635 = vpop.f32.mrf.mxu0
    %v636 = vadd.f32 0.0, %v635
    %637 = vdwg.mxu0
    %638 = vmatpush.msra.mxu0 %v273
    %639 = vmatpush.msra.mxu0 %v269
    %640 = vmatpush.msra.mxu0 %v265
    %641 = vmatpush.msra.mxu0 %v261
    %642 = vmatpush.msra.mxu0 %v257
    %643 = vmatpush.msra.mxu0 %v253
    %644 = vmatpush.msra.mxu0 %v249
    %645 = vmatpush.msra.mxu0 %v245
    %646 = vmatpush.msra.mxu0 %v241
    %647 = vmatpush.msra.mxu0 %v237
    %648 = vmatpush.msra.mxu0 %v233
    %649 = vmatpush.msra.mxu0 %v229
    %650 = vmatpush.msra.mxu0 %v225
    %651 = vmatpush.msra.mxu0 %v221
    %652 = vmatpush.msra.mxu0 %v217
    %653 = vmatpush.msra.mxu0 %v213
    %654 = vmatmul.f32.gmra.mxu0 %v615
    %v655 = vpop.f32.mrf.mxu0
    %v656 = vadd.f32 0.0, %v655
    %657 = vdwg.mxu0
    %658 = vmatpush.msra.mxu0 %v274
    %659 = vmatpush.msra.mxu0 %v270
    %660 = vmatpush.msra.mxu0 %v266
    %661 = vmatpush.msra.mxu0 %v262
    %662 = vmatpush.msra.mxu0 %v258
    %663 = vmatpush.msra.mxu0 %v254
    %664 = vmatpush.msra.mxu0 %v250
    %665 = vmatpush.msra.mxu0 %v246
    %666 = vmatpush.msra.mxu0 %v242
    %667 = vmatpush.msra.mxu0 %v238
    %668 = vmatpush.msra.mxu0 %v234
    %669 = vmatpush.msra.mxu0 %v230
    %670 = vmatpush.msra.mxu0 %v226
    %671 = vmatpush.msra.mxu0 %v222
    %672 = vmatpush.msra.mxu0 %v218
    %673 = vmatpush.msra.mxu0 %v214
    %674 = vmatmul.f32.gmra.mxu0 %v615
    %v675 = vpop.f32.mrf.mxu0
    %v676 = vadd.f32 0.0, %v675
    %677 = vdwg.mxu0
    %678 = vmatpush.msra.mxu0 %v275
    %679 = vmatpush.msra.mxu0 %v271
    %680 = vmatpush.msra.mxu0 %v267
    %681 = vmatpush.msra.mxu0 %v263
    %682 = vmatpush.msra.mxu0 %v259
    %683 = vmatpush.msra.mxu0 %v255
    %684 = vmatpush.msra.mxu0 %v251
    %685 = vmatpush.msra.mxu0 %v247
    %686 = vmatpush.msra.mxu0 %v243
    %687 = vmatpush.msra.mxu0 %v239
    %688 = vmatpush.msra.mxu0 %v235
    %689 = vmatpush.msra.mxu0 %v231
    %690 = vmatpush.msra.mxu0 %v227
    %691 = vmatpush.msra.mxu0 %v223
    %692 = vmatpush.msra.mxu0 %v219
    %693 = vmatpush.msra.mxu0 %v215
    %694 = vmatmul.f32.gmra.mxu0 %v615
    %v695 = vpop.f32.mrf.mxu0
    %v696 = vadd.f32 0.0, %v695
    %697 = vdwg.mxu0
    %v702 = vrot.slane %v656, 7
    %v703 = vrot.slane %v676, 6
    %v704 = vrot.slane %v696, 5
    %v705 = vsel %vm363, %v636, %v702
    %v706 = vsel %vm365, %v703, %v704
    %v707 = vsel %vm367, %v705, %v706
    %v709 = vadd.f32 %v617, %v707
    %v710 = vtanh.pop %v709
    %v711 = vmul.f32 %v710, 0.5
    %v712 = vadd.f32 %v711, 0.5
    %v714 = vrot.slane %v710, 1
    %v716 = vmul.f32 %v714, 0.5
    %v717 = vadd.f32 %v716, 0.5
    %v718 = vrot.slane %v710, 3
    %v720 = vmul.f32 %v718, 0.5
    %v721 = vadd.f32 %v720, 0.5
    %v722 = vmul.f32 %v717, %v613
    %v723 = vrot.slane %v710, 2
    %v725 = vmul.f32 %v712, %v723
    %v726 = vadd.f32 %v722, %v725
    %v727 = vtanh.pop %v726
    %v728 = vmul.f32 %v721, %v727
    %s729 = scalar_lea.vmem [#allocation2], 4
    %v730 = vld [vmem:[%s729] ss:$8 sm:$0xf]
    %731 = vmatpush.msra.mxu0 %v272
    %732 = vmatpush.msra.mxu0 %v268
    %733 = vmatpush.msra.mxu0 %v264
    %734 = vmatpush.msra.mxu0 %v260
    %735 = vmatpush.msra.mxu0 %v256
    %736 = vmatpush.msra.mxu0 %v252
    %737 = vmatpush.msra.mxu0 %v248
    %738 = vmatpush.msra.mxu0 %v244
    %739 = vmatpush.msra.mxu0 %v240
    %740 = vmatpush.msra.mxu0 %v236
    %741 = vmatpush.msra.mxu0 %v232
    %742 = vmatpush.msra.mxu0 %v228
    %743 = vmatpush.msra.mxu0 %v224
    %744 = vmatpush.msra.mxu0 %v220
    %745 = vmatpush.msra.mxu0 %v216
    %746 = vmatpush.msra.mxu0 %v212
    %747 = vmatmul.f32.gmra.mxu0 %v728
    %v748 = vpop.f32.mrf.mxu0
    %v749 = vadd.f32 0.0, %v748
    %750 = vdwg.mxu0
    %751 = vmatpush.msra.mxu0 %v273
    %752 = vmatpush.msra.mxu0 %v269
    %753 = vmatpush.msra.mxu0 %v265
    %754 = vmatpush.msra.mxu0 %v261
    %755 = vmatpush.msra.mxu0 %v257
    %756 = vmatpush.msra.mxu0 %v253
    %757 = vmatpush.msra.mxu0 %v249
    %758 = vmatpush.msra.mxu0 %v245
    %759 = vmatpush.msra.mxu0 %v241
    %760 = vmatpush.msra.mxu0 %v237
    %761 = vmatpush.msra.mxu0 %v233
    %762 = vmatpush.msra.mxu0 %v229
    %763 = vmatpush.msra.mxu0 %v225
    %764 = vmatpush.msra.mxu0 %v221
    %765 = vmatpush.msra.mxu0 %v217
    %766 = vmatpush.msra.mxu0 %v213
    %767 = vmatmul.f32.gmra.mxu0 %v728
    %v768 = vpop.f32.mrf.mxu0
    %v769 = vadd.f32 0.0, %v768
    %770 = vdwg.mxu0
    %771 = vmatpush.msra.mxu0 %v274
    %772 = vmatpush.msra.mxu0 %v270
    %773 = vmatpush.msra.mxu0 %v266
    %774 = vmatpush.msra.mxu0 %v262
    %775 = vmatpush.msra.mxu0 %v258
    %776 = vmatpush.msra.mxu0 %v254
    %777 = vmatpush.msra.mxu0 %v250
    %778 = vmatpush.msra.mxu0 %v246
    %779 = vmatpush.msra.mxu0 %v242
    %780 = vmatpush.msra.mxu0 %v238
    %781 = vmatpush.msra.mxu0 %v234
    %782 = vmatpush.msra.mxu0 %v230
    %783 = vmatpush.msra.mxu0 %v226
    %784 = vmatpush.msra.mxu0 %v222
    %785 = vmatpush.msra.mxu0 %v218
    %786 = vmatpush.msra.mxu0 %v214
    %787 = vmatmul.f32.gmra.mxu0 %v728
    %v788 = vpop.f32.mrf.mxu0
    %v789 = vadd.f32 0.0, %v788
    %790 = vdwg.mxu0
    %791 = vmatpush.msra.mxu0 %v275
    %792 = vmatpush.msra.mxu0 %v271
    %793 = vmatpush.msra.mxu0 %v267
    %794 = vmatpush.msra.mxu0 %v263
    %795 = vmatpush.msra.mxu0 %v259
    %796 = vmatpush.msra.mxu0 %v255
    %797 = vmatpush.msra.mxu0 %v251
    %798 = vmatpush.msra.mxu0 %v247
    %799 = vmatpush.msra.mxu0 %v243
    %800 = vmatpush.msra.mxu0 %v239
    %801 = vmatpush.msra.mxu0 %v235
    %802 = vmatpush.msra.mxu0 %v231
    %803 = vmatpush.msra.mxu0 %v227
    %804 = vmatpush.msra.mxu0 %v223
    %805 = vmatpush.msra.mxu0 %v219
    %806 = vmatpush.msra.mxu0 %v215
    %807 = vmatmul.f32.gmra.mxu0 %v728
    %v808 = vpop.f32.mrf.mxu0
    %v809 = vadd.f32 0.0, %v808
    %810 = vdwg.mxu0
    %v815 = vrot.slane %v769, 7
    %v816 = vrot.slane %v789, 6
    %v817 = vrot.slane %v809, 5
    %v818 = vsel %vm363, %v749, %v815
    %v819 = vsel %vm365, %v816, %v817
    %v820 = vsel %vm367, %v818, %v819
    %v822 = vadd.f32 %v730, %v820
    %v823 = vtanh.pop %v822
    %v824 = vmul.f32 %v823, 0.5
    %v825 = vadd.f32 %v824, 0.5
    %v827 = vrot.slane %v823, 1
    %v829 = vmul.f32 %v827, 0.5
    %v830 = vadd.f32 %v829, 0.5
    %v831 = vrot.slane %v823, 3
    %v833 = vmul.f32 %v831, 0.5
    %v834 = vadd.f32 %v833, 0.5
    %v835 = vmul.f32 %v830, %v726
    %v836 = vrot.slane %v823, 2
    %v838 = vmul.f32 %v825, %v836
    %v839 = vadd.f32 %v835, %v838
    %v840 = vtanh.pop %v839
    %v841 = vmul.f32 %v834, %v840
    %s842 = scalar_lea.vmem [#allocation2], 5
    %v843 = vld [vmem:[%s842] ss:$8 sm:$0xf]
    %844 = vmatpush.msra.mxu0 %v272
    %845 = vmatpush.msra.mxu0 %v268
    %846 = vmatpush.msra.mxu0 %v264
    %847 = vmatpush.msra.mxu0 %v260
    %848 = vmatpush.msra.mxu0 %v256
    %849 = vmatpush.msra.mxu0 %v252
    %850 = vmatpush.msra.mxu0 %v248
    %851 = vmatpush.msra.mxu0 %v244
    %852 = vmatpush.msra.mxu0 %v240
    %853 = vmatpush.msra.mxu0 %v236
    %854 = vmatpush.msra.mxu0 %v232
    %855 = vmatpush.msra.mxu0 %v228
    %856 = vmatpush.msra.mxu0 %v224
    %857 = vmatpush.msra.mxu0 %v220
    %858 = vmatpush.msra.mxu0 %v216
    %859 = vmatpush.msra.mxu0 %v212
    %860 = vmatmul.f32.gmra.mxu0 %v841
    %v861 = vpop.f32.mrf.mxu0
    %v862 = vadd.f32 0.0, %v861
    %863 = vdwg.mxu0
    %864 = vmatpush.msra.mxu0 %v273
    %865 = vmatpush.msra.mxu0 %v269
    %866 = vmatpush.msra.mxu0 %v265
    %867 = vmatpush.msra.mxu0 %v261
    %868 = vmatpush.msra.mxu0 %v257
    %869 = vmatpush.msra.mxu0 %v253
    %870 = vmatpush.msra.mxu0 %v249
    %871 = vmatpush.msra.mxu0 %v245
    %872 = vmatpush.msra.mxu0 %v241
    %873 = vmatpush.msra.mxu0 %v237
    %874 = vmatpush.msra.mxu0 %v233
    %875 = vmatpush.msra.mxu0 %v229
    %876 = vmatpush.msra.mxu0 %v225
    %877 = vmatpush.msra.mxu0 %v221
    %878 = vmatpush.msra.mxu0 %v217
    %879 = vmatpush.msra.mxu0 %v213
    %880 = vmatmul.f32.gmra.mxu0 %v841
    %v881 = vpop.f32.mrf.mxu0
    %v882 = vadd.f32 0.0, %v881
    %883 = vdwg.mxu0
    %884 = vmatpush.msra.mxu0 %v274
    %885 = vmatpush.msra.mxu0 %v270
    %886 = vmatpush.msra.mxu0 %v266
    %887 = vmatpush.msra.mxu0 %v262
    %888 = vmatpush.msra.mxu0 %v258
    %889 = vmatpush.msra.mxu0 %v254
    %890 = vmatpush.msra.mxu0 %v250
    %891 = vmatpush.msra.mxu0 %v246
    %892 = vmatpush.msra.mxu0 %v242
    %893 = vmatpush.msra.mxu0 %v238
    %894 = vmatpush.msra.mxu0 %v234
    %895 = vmatpush.msra.mxu0 %v230
    %896 = vmatpush.msra.mxu0 %v226
    %897 = vmatpush.msra.mxu0 %v222
    %898 = vmatpush.msra.mxu0 %v218
    %899 = vmatpush.msra.mxu0 %v214
    %900 = vmatmul.f32.gmra.mxu0 %v841
    %v901 = vpop.f32.mrf.mxu0
    %v902 = vadd.f32 0.0, %v901
    %903 = vdwg.mxu0
    %904 = vmatpush.msra.mxu0 %v275
    %905 = vmatpush.msra.mxu0 %v271
    %906 = vmatpush.msra.mxu0 %v267
    %907 = vmatpush.msra.mxu0 %v263
    %908 = vmatpush.msra.mxu0 %v259
    %909 = vmatpush.msra.mxu0 %v255
    %910 = vmatpush.msra.mxu0 %v251
    %911 = vmatpush.msra.mxu0 %v247
    %912 = vmatpush.msra.mxu0 %v243
    %913 = vmatpush.msra.mxu0 %v239
    %914 = vmatpush.msra.mxu0 %v235
    %915 = vmatpush.msra.mxu0 %v231
    %916 = vmatpush.msra.mxu0 %v227
    %917 = vmatpush.msra.mxu0 %v223
    %918 = vmatpush.msra.mxu0 %v219
    %919 = vmatpush.msra.mxu0 %v215
    %920 = vmatmul.f32.gmra.mxu0 %v841
    %v921 = vpop.f32.mrf.mxu0
    %v922 = vadd.f32 0.0, %v921
    %923 = vdwg.mxu0
    %v928 = vrot.slane %v882, 7
    %v929 = vrot.slane %v902, 6
    %v930 = vrot.slane %v922, 5
    %v931 = vsel %vm363, %v862, %v928
    %v932 = vsel %vm365, %v929, %v930
    %v933 = vsel %vm367, %v931, %v932
    %v935 = vadd.f32 %v843, %v933
    %v936 = vtanh.pop %v935
    %v937 = vmul.f32 %v936, 0.5
    %v938 = vadd.f32 %v937, 0.5
    %v940 = vrot.slane %v936, 1
    %v942 = vmul.f32 %v940, 0.5
    %v943 = vadd.f32 %v942, 0.5
    %v944 = vrot.slane %v936, 3
    %v946 = vmul.f32 %v944, 0.5
    %v947 = vadd.f32 %v946, 0.5
    %v948 = vmul.f32 %v943, %v839
    %v949 = vrot.slane %v936, 2
    %v951 = vmul.f32 %v938, %v949
    %v952 = vadd.f32 %v948, %v951
    %v953 = vtanh.pop %v952
    %v954 = vmul.f32 %v947, %v953
    %s955 = scalar_lea.vmem [#allocation2], 6
    %v956 = vld [vmem:[%s955] ss:$8 sm:$0xf]
    %957 = vmatpush.msra.mxu0 %v272
    %958 = vmatpush.msra.mxu0 %v268
    %959 = vmatpush.msra.mxu0 %v264
    %960 = vmatpush.msra.mxu0 %v260
    %961 = vmatpush.msra.mxu0 %v256
    %962 = vmatpush.msra.mxu0 %v252
    %963 = vmatpush.msra.mxu0 %v248
    %964 = vmatpush.msra.mxu0 %v244
    %965 = vmatpush.msra.mxu0 %v240
    %966 = vmatpush.msra.mxu0 %v236
    %967 = vmatpush.msra.mxu0 %v232
    %968 = vmatpush.msra.mxu0 %v228
    %969 = vmatpush.msra.mxu0 %v224
    %970 = vmatpush.msra.mxu0 %v220
    %971 = vmatpush.msra.mxu0 %v216
    %972 = vmatpush.msra.mxu0 %v212
    %973 = vmatmul.f32.gmra.mxu0 %v954
    %v974 = vpop.f32.mrf.mxu0
    %v975 = vadd.f32 0.0, %v974
    %976 = vdwg.mxu0
    %977 = vmatpush.msra.mxu0 %v273
    %978 = vmatpush.msra.mxu0 %v269
    %979 = vmatpush.msra.mxu0 %v265
    %980 = vmatpush.msra.mxu0 %v261
    %981 = vmatpush.msra.mxu0 %v257
    %982 = vmatpush.msra.mxu0 %v253
    %983 = vmatpush.msra.mxu0 %v249
    %984 = vmatpush.msra.mxu0 %v245
    %985 = vmatpush.msra.mxu0 %v241
    %986 = vmatpush.msra.mxu0 %v237
    %987 = vmatpush.msra.mxu0 %v233
    %988 = vmatpush.msra.mxu0 %v229
    %989 = vmatpush.msra.mxu0 %v225
    %990 = vmatpush.msra.mxu0 %v221
    %991 = vmatpush.msra.mxu0 %v217
    %992 = vmatpush.msra.mxu0 %v213
    %993 = vmatmul.f32.gmra.mxu0 %v954
    %v994 = vpop.f32.mrf.mxu0
    %v995 = vadd.f32 0.0, %v994
    %996 = vdwg.mxu0
    %997 = vmatpush.msra.mxu0 %v274
    %998 = vmatpush.msra.mxu0 %v270
    %999 = vmatpush.msra.mxu0 %v266
    %1000 = vmatpush.msra.mxu0 %v262
    %1001 = vmatpush.msra.mxu0 %v258
    %1002 = vmatpush.msra.mxu0 %v254
    %1003 = vmatpush.msra.mxu0 %v250
    %1004 = vmatpush.msra.mxu0 %v246
    %1005 = vmatpush.msra.mxu0 %v242
    %1006 = vmatpush.msra.mxu0 %v238
    %1007 = vmatpush.msra.mxu0 %v234
    %1008 = vmatpush.msra.mxu0 %v230
    %1009 = vmatpush.msra.mxu0 %v226
    %1010 = vmatpush.msra.mxu0 %v222
    %1011 = vmatpush.msra.mxu0 %v218
    %1012 = vmatpush.msra.mxu0 %v214
    %1013 = vmatmul.f32.gmra.mxu0 %v954
    %v1014 = vpop.f32.mrf.mxu0
    %v1015 = vadd.f32 0.0, %v1014
    %1016 = vdwg.mxu0
    %1017 = vmatpush.msra.mxu0 %v275
    %1018 = vmatpush.msra.mxu0 %v271
    %1019 = vmatpush.msra.mxu0 %v267
    %1020 = vmatpush.msra.mxu0 %v263
    %1021 = vmatpush.msra.mxu0 %v259
    %1022 = vmatpush.msra.mxu0 %v255
    %1023 = vmatpush.msra.mxu0 %v251
    %1024 = vmatpush.msra.mxu0 %v247
    %1025 = vmatpush.msra.mxu0 %v243
    %1026 = vmatpush.msra.mxu0 %v239
    %1027 = vmatpush.msra.mxu0 %v235
    %1028 = vmatpush.msra.mxu0 %v231
    %1029 = vmatpush.msra.mxu0 %v227
    %1030 = vmatpush.msra.mxu0 %v223
    %1031 = vmatpush.msra.mxu0 %v219
    %1032 = vmatpush.msra.mxu0 %v215
    %1033 = vmatmul.f32.gmra.mxu0 %v954
    %v1034 = vpop.f32.mrf.mxu0
    %v1035 = vadd.f32 0.0, %v1034
    %1036 = vdwg.mxu0
    %v1041 = vrot.slane %v995, 7
    %v1042 = vrot.slane %v1015, 6
    %v1043 = vrot.slane %v1035, 5
    %v1044 = vsel %vm363, %v975, %v1041
    %v1045 = vsel %vm365, %v1042, %v1043
    %v1046 = vsel %vm367, %v1044, %v1045
    %v1048 = vadd.f32 %v956, %v1046
    %v1049 = vtanh.pop %v1048
    %v1050 = vmul.f32 %v1049, 0.5
    %v1051 = vadd.f32 %v1050, 0.5
    %v1053 = vrot.slane %v1049, 1
    %v1055 = vmul.f32 %v1053, 0.5
    %v1056 = vadd.f32 %v1055, 0.5
    %v1057 = vrot.slane %v1049, 3
    %v1059 = vmul.f32 %v1057, 0.5
    %v1060 = vadd.f32 %v1059, 0.5
    %v1061 = vmul.f32 %v1056, %v952
    %v1062 = vrot.slane %v1049, 2
    %v1064 = vmul.f32 %v1051, %v1062
    %v1065 = vadd.f32 %v1061, %v1064
    %v1066 = vtanh.pop %v1065
    %v1067 = vmul.f32 %v1060, %v1066
    %s1068 = scalar_lea.vmem [#allocation2], 7
    %v1069 = vld [vmem:[%s1068] ss:$8 sm:$0xf]
    %1070 = vmatpush.msra.mxu0 %v272
    %1071 = vmatpush.msra.mxu0 %v268
    %1072 = vmatpush.msra.mxu0 %v264
    %1073 = vmatpush.msra.mxu0 %v260
    %1074 = vmatpush.msra.mxu0 %v256
    %1075 = vmatpush.msra.mxu0 %v252
    %1076 = vmatpush.msra.mxu0 %v248
    %1077 = vmatpush.msra.mxu0 %v244
    %1078 = vmatpush.msra.mxu0 %v240
    %1079 = vmatpush.msra.mxu0 %v236
    %1080 = vmatpush.msra.mxu0 %v232
    %1081 = vmatpush.msra.mxu0 %v228
    %1082 = vmatpush.msra.mxu0 %v224
    %1083 = vmatpush.msra.mxu0 %v220
    %1084 = vmatpush.msra.mxu0 %v216
    %1085 = vmatpush.msra.mxu0 %v212
    %1086 = vmatmul.f32.gmra.mxu0 %v1067
    %v1087 = vpop.f32.mrf.mxu0
    %v1088 = vadd.f32 0.0, %v1087
    %1089 = vdwg.mxu0
    %1090 = vmatpush.msra.mxu0 %v273
    %1091 = vmatpush.msra.mxu0 %v269
    %1092 = vmatpush.msra.mxu0 %v265
    %1093 = vmatpush.msra.mxu0 %v261
    %1094 = vmatpush.msra.mxu0 %v257
    %1095 = vmatpush.msra.mxu0 %v253
    %1096 = vmatpush.msra.mxu0 %v249
    %1097 = vmatpush.msra.mxu0 %v245
    %1098 = vmatpush.msra.mxu0 %v241
    %1099 = vmatpush.msra.mxu0 %v237
    %1100 = vmatpush.msra.mxu0 %v233
    %1101 = vmatpush.msra.mxu0 %v229
    %1102 = vmatpush.msra.mxu0 %v225
    %1103 = vmatpush.msra.mxu0 %v221
    %1104 = vmatpush.msra.mxu0 %v217
    %1105 = vmatpush.msra.mxu0 %v213
    %1106 = vmatmul.f32.gmra.mxu0 %v1067
    %v1107 = vpop.f32.mrf.mxu0
    %v1108 = vadd.f32 0.0, %v1107
    %1109 = vdwg.mxu0
    %1110 = vmatpush.msra.mxu0 %v274
    %1111 = vmatpush.msra.mxu0 %v270
    %1112 = vmatpush.msra.mxu0 %v266
    %1113 = vmatpush.msra.mxu0 %v262
    %1114 = vmatpush.msra.mxu0 %v258
    %1115 = vmatpush.msra.mxu0 %v254
    %1116 = vmatpush.msra.mxu0 %v250
    %1117 = vmatpush.msra.mxu0 %v246
    %1118 = vmatpush.msra.mxu0 %v242
    %1119 = vmatpush.msra.mxu0 %v238
    %1120 = vmatpush.msra.mxu0 %v234
    %1121 = vmatpush.msra.mxu0 %v230
    %1122 = vmatpush.msra.mxu0 %v226
    %1123 = vmatpush.msra.mxu0 %v222
    %1124 = vmatpush.msra.mxu0 %v218
    %1125 = vmatpush.msra.mxu0 %v214
    %1126 = vmatmul.f32.gmra.mxu0 %v1067
    %v1127 = vpop.f32.mrf.mxu0
    %v1128 = vadd.f32 0.0, %v1127
    %1129 = vdwg.mxu0
    %1130 = vmatpush.msra.mxu0 %v275
    %1131 = vmatpush.msra.mxu0 %v271
    %1132 = vmatpush.msra.mxu0 %v267
    %1133 = vmatpush.msra.mxu0 %v263
    %1134 = vmatpush.msra.mxu0 %v259
    %1135 = vmatpush.msra.mxu0 %v255
    %1136 = vmatpush.msra.mxu0 %v251
    %1137 = vmatpush.msra.mxu0 %v247
    %1138 = vmatpush.msra.mxu0 %v243
    %1139 = vmatpush.msra.mxu0 %v239
    %1140 = vmatpush.msra.mxu0 %v235
    %1141 = vmatpush.msra.mxu0 %v231
    %1142 = vmatpush.msra.mxu0 %v227
    %1143 = vmatpush.msra.mxu0 %v223
    %1144 = vmatpush.msra.mxu0 %v219
    %1145 = vmatpush.msra.mxu0 %v215
    %1146 = vmatmul.f32.gmra.mxu0 %v1067
    %v1147 = vpop.f32.mrf.mxu0
    %v1148 = vadd.f32 0.0, %v1147
    %1149 = vdwg.mxu0
    %v1154 = vrot.slane %v1108, 7
    %v1155 = vrot.slane %v1128, 6
    %v1156 = vrot.slane %v1148, 5
    %v1157 = vsel %vm363, %v1088, %v1154
    %v1158 = vsel %vm365, %v1155, %v1156
    %v1159 = vsel %vm367, %v1157, %v1158
    %v1161 = vadd.f32 %v1069, %v1159
    %v1162 = vtanh.pop %v1161
    %v1163 = vmul.f32 %v1162, 0.5
    %v1164 = vadd.f32 %v1163, 0.5
    %v1166 = vrot.slane %v1162, 1
    %v1168 = vmul.f32 %v1166, 0.5
    %v1169 = vadd.f32 %v1168, 0.5
    %v1170 = vrot.slane %v1162, 3
    %v1172 = vmul.f32 %v1170, 0.5
    %v1173 = vadd.f32 %v1172, 0.5
    %v1174 = vmul.f32 %v1169, %v1065
    %v1175 = vrot.slane %v1162, 2
    %v1177 = vmul.f32 %v1164, %v1175
    %v1178 = vadd.f32 %v1174, %v1177
    %v1179 = vtanh.pop %v1178
    %v1180 = vmul.f32 %v1173, %v1179
    %v1181 = vld [vmem:[#allocation10] sm:$0xff]
    %v1182 = vld [vmem:[#allocation10 + $0x8] sm:$0xff]
    %v1183 = vld [vmem:[#allocation10 + $0x10] sm:$0xff]
    %v1184 = vld [vmem:[#allocation10 + $0x18] sm:$0xff]
    %v1185 = vld [vmem:[#allocation10 + $0x20] sm:$0xff]
    %v1186 = vld [vmem:[#allocation10 + $0x28] sm:$0xff]
    %v1187 = vld [vmem:[#allocation10 + $0x30] sm:$0xff]
    %v1188 = vld [vmem:[#allocation10 + $0x38] sm:$0xff]
    %v1189 = vld [vmem:[#allocation10 + $0x40] sm:$0xff]
    %v1190 = vld [vmem:[#allocation10 + $0x48] sm:$0xff]
    %v1191 = vld [vmem:[#allocation10 + $0x50] sm:$0xff]
    %v1192 = vld [vmem:[#allocation10 + $0x58] sm:$0xff]
    %v1193 = vld [vmem:[#allocation10 + $0x60] sm:$0xff]
    %v1194 = vld [vmem:[#allocation10 + $0x68] sm:$0xff]
    %v1195 = vld [vmem:[#allocation10 + $0x70] sm:$0xff]
    %v1196 = vld [vmem:[#allocation10 + $0x78] sm:$0xff]
    %v1197 = vld [vmem:[%s5] sm:$0x1]
    %1198 = vmatpush.msra.mxu0 %v1196
    %1199 = vmatpush.msra.mxu0 %v1195
    %1200 = vmatpush.msra.mxu0 %v1194
    %1201 = vmatpush.msra.mxu0 %v1193
    %1202 = vmatpush.msra.mxu0 %v1192
    %1203 = vmatpush.msra.mxu0 %v1191
    %1204 = vmatpush.msra.mxu0 %v1190
    %1205 = vmatpush.msra.mxu0 %v1189
    %1206 = vmatpush.msra.mxu0 %v1188
    %1207 = vmatpush.msra.mxu0 %v1187
    %1208 = vmatpush.msra.mxu0 %v1186
    %1209 = vmatpush.msra.mxu0 %v1185
    %1210 = vmatpush.msra.mxu0 %v1184
    %1211 = vmatpush.msra.mxu0 %v1183
    %1212 = vmatpush.msra.mxu0 %v1182
    %1213 = vmatpush.msra.mxu0 %v1181
    %1214 = vmatmul.f32.gmra.mxu0 %v1180
    %v1215 = vpop.f32.mrf.mxu0
    %v1216 = vadd.f32 %v1197, %v1215
    %1217 = vdwg.mxu0
    %1218 = vst [vmem:[%s6] sm:$0x1] %v1216
    // Predicated region
    $region46: #{lstm_forward.1} parent=1 // pred_check
      _
    $region47: #{lstm_forward.1} parent=1 // pred_check_branch
      %1220 = sbr.rel (0) target = $region49
    $region48: #{lstm_forward.1} parent=1 // pred_region
      _
    $region49: #{lstm_forward.1} parent=1 // pred_fallthru
      _
    // Predicated region
    $region50: #{lstm_forward.1} parent=1 // pred_check
      _
    $region51: #{lstm_forward.1} parent=1 // pred_check_branch
      %1222 = sbr.rel (0) target = $region53
    $region52: #{lstm_forward.1} parent=1 // pred_region
      _
    $region53: #{lstm_forward.1} parent=1 // pred_fallthru
      _
    %1223 = vsyncpa [#allocation4], 1
    %1224 = vsyncpa [#allocation6], 1
    %1225 = vsyncpa [#allocation9], 1

</llo_original>
